<compile_context>
chip_gen: v5e
topology: v5e:2x2
jax: 0.10.0
libtpu: 0.0.40
codegen_flags: <defaults>
</compile_context>

<pallas_src>
import numpy as np

import jax
import jax.numpy as jnp
from jax.experimental import pallas as pl
from jax.experimental.pallas import tpu as pltpu


_NEG_SLOPE = 0.2
_BN_EPS = 1e-5


# ----------------------------------------------------------------------------
# Fused kernel
# ----------------------------------------------------------------------------
def _make_dcgan_d_kernel(n_batch, layer_kinds):
    """Build the fused forward kernel.

    Input refs, in order:
        x2d                          [N, H, C*W]            input images
        per conv layer:
            S                        [k, Ho, H]              row select (stride+pad)
            M                        [k, C_in*W, C_out*Wo]   Toeplitz weights
            B  (BatchNorm layers)    [C*Wo, C*Wo]            per-channel fold / count
        w3                           [k, C*W]                final conv weights / N
    Last ref is the single (1, 1) output.
    """

    def kernel(*refs):
        out_ref = refs[-1]
        x_ref = refs[0]
        idx = 1

        # Per-image activation slabs, layout [H, C*W] (channel-blocked columns).
        # Kept resident on-chip for the whole forward pass.
        acts = [x_ref[n] for n in range(n_batch)]

        for kind in layer_kinds:
            s_ref, m_ref = refs[idx], refs[idx + 1]
            idx += 2
            k = s_ref.shape[0]

            outs = []
            for n in range(n_batch):
                acc = None
                for kh in range(k):
                    # rows[ho, :] = A_n[stride*ho + kh - pad, :]  (zero rows for padding)
                    rows = jnp.dot(s_ref[kh], acts[n],
                                   preferred_element_type=jnp.float32)
                    # contract over (c_in, kw); horizontal stride/pad folded into M
                    part = jnp.dot(rows, m_ref[kh],
                                   preferred_element_type=jnp.float32)
                    acc = part if acc is None else acc + part
                outs.append(acc)

            if kind == "bn_lrelu":
                # BatchNorm2d, training-mode batch statistics, weight=1, bias=0.
                b = refs[idx][...]        # block-diag ones / (N*Ho*Wo)
                idx += 1
                row_sum = outs[0].sum(axis=0, keepdims=True)
                for n in range(1, n_batch):
                    row_sum = row_sum + outs[n].sum(axis=0, keepdims=True)
                mean_row = jnp.dot(row_sum, b, preferred_element_type=jnp.float32)
                diffs = [o - mean_row for o in outs]
                sq_sum = (diffs[0] * diffs[0]).sum(axis=0, keepdims=True)
                for n in range(1, n_batch):
                    sq_sum = sq_sum + (diffs[n] * diffs[n]).sum(axis=0, keepdims=True)
                var_row = jnp.dot(sq_sum, b, preferred_element_type=jnp.float32)
                inv_row = jax.lax.rsqrt(var_row + _BN_EPS)        # EUP slot
                # LeakyReLU fused with the BN scale: inv_row > 0, so the sign of
                # the normalised value equals the sign of (x - mean).
                acts = [jnp.where(d >= 0.0, d, _NEG_SLOPE * d) * inv_row
                        for d in diffs]
            else:
                acts = [jnp.where(o >= 0.0, o, _NEG_SLOPE * o) for o in outs]

        # Final kxk valid conv (one output position per image) + batch mean.
        # 1/N is folded into w3, so this is just sum_n sum(act_n * w3).
        assert idx == len(refs) - 2
        w3 = refs[idx][...]
        total = None
        for n in range(n_batch):
            p = acts[n] * w3
            s = p.sum(axis=1, keepdims=True).sum(axis=0, keepdims=True)
            total = s if total is None else total + s
        out_ref[...] = total

    return kernel


# ----------------------------------------------------------------------------
# Weight preprocessing (done once, outside the kernel)
# ----------------------------------------------------------------------------
def _selection_matrices(k, stride, pad, h_in, h_out):
    """S[kh, ho, h] = 1 iff h == stride*ho + kh - pad (padding rows -> all-zero)."""
    s = np.zeros((k, h_out, h_in), np.float32)
    for kh in range(k):
        for ho in range(h_out):
            h = stride * ho + kh - pad
            if 0 <= h < h_in:
                s[kh, ho, h] = 1.0
    return jnp.asarray(s)


def _toeplitz_weight_matrices(w, stride, pad, w_in, w_out):
    """M[kh, c*w_in + x, co*w_out + wo] = w[co, c, kh, x - stride*wo + pad] (if valid)."""
    c_out, c_in, k, _ = w.shape
    p = np.zeros((k, w_in, w_out), np.float32)
    for kw in range(k):
        for wo in range(w_out):
            x = stride * wo + kw - pad
            if 0 <= x < w_in:
                p[kw, x, wo] = 1.0
    m = jnp.einsum("ochk,kxq->hcxoq", w.astype(jnp.float32), jnp.asarray(p))
    return m.reshape(k, c_in * w_in, c_out * w_out)


def _bn_fold_matrix(c, wo, count):
    """Block-diagonal ones / count: row_sums @ B = per-channel mean broadcast
    back over that channel's wo columns."""
    b = np.zeros((c * wo, c * wo), np.float32)
    for ci in range(c):
        b[ci * wo:(ci + 1) * wo, ci * wo:(ci + 1) * wo] = 1.0 / count
    return jnp.asarray(b)


# ----------------------------------------------------------------------------
# Model: parameters + forward
# ----------------------------------------------------------------------------
def init_dcgan_d_params(key, input_nc, ndf, isize, n_extra_layers=0):
    assert isize % 16 == 0, "isize has to be a multiple of 16"
    params = []
    key, sub = jax.random.split(key)
    params.append(("conv_lrelu",
                   0.02 * jax.random.normal(sub, (ndf, input_nc, 4, 4), jnp.float32),
                   4, 2, 1))
    csize, cndf = isize // 2, ndf
    for _ in range(n_extra_layers):
        key, sub = jax.random.split(key)
        params.append(("conv_bn_lrelu",
                       0.02 * jax.random.normal(sub, (cndf, cndf, 3, 3), jnp.float32),
                       3, 1, 1))
    while csize > 4:
        in_feat, out_feat = cndf, cndf * 2
        key, sub = jax.random.split(key)
        params.append(("conv_bn_lrelu",
                       0.02 * jax.random.normal(sub, (out_feat, in_feat, 4, 4),
                                                jnp.float32),
                       4, 2, 1))
        cndf, csize = out_feat, csize // 2
    key, sub = jax.random.split(key)
    params.append(("final",
                   0.02 * jax.random.normal(sub, (1, cndf, 4, 4), jnp.float32),
                   4, 1, 0))
    return params


def dcgan_d_forward(params, x_nchw):
    x = x_nchw.astype(jnp.float32)
    n, c, h, w = x.shape
    assert h == w, "square inputs expected"

    # Only input-layout prep happens outside the kernel: NCHW -> [N, H, C*W]
    # (one transpose + reshape of the raw input; no im2col, no padding, no dup).
    x2d = jnp.transpose(x, (0, 2, 1, 3)).reshape(n, h, c * w)

    operands = [x2d]
    in_specs = [pl.BlockSpec(x2d.shape, lambda i: (0, 0, 0))]
    layer_kinds = []
    cur_h, cur_c = h, c

    for kind, wgt, k, stride, pad in params:
        c_out = wgt.shape[0]
        h_out = (cur_h + 2 * pad - k) // stride + 1
        if kind == "final":
            assert stride == 1 and pad == 0 and h_out == 1 and cur_h == k
            # w3[kh, ci*k + kw] = wgt[0, ci, kh, kw] / N   (batch mean folded in)
            w3 = jnp.transpose(wgt[0].astype(jnp.float32), (1, 0, 2))
            w3 = w3.reshape(k, cur_c * k) * (1.0 / n)
            operands.append(w3)
            in_specs.append(pl.BlockSpec(w3.shape, lambda i: (0, 0)))
            break
        s = _selection_matrices(k, stride, pad, cur_h, h_out)
        m = _toeplitz_weight_matrices(wgt, stride, pad, cur_h, h_out)
        operands += [s, m]
        in_specs += [pl.BlockSpec(s.shape, lambda i: (0, 0, 0)),
                     pl.BlockSpec(m.shape, lambda i: (0, 0, 0))]
        if kind == "conv_bn_lrelu":
            b = _bn_fold_matrix(c_out, h_out, n * h_out * h_out)
            operands.append(b)
            in_specs.append(pl.BlockSpec(b.shape, lambda i: (0, 0)))
            layer_kinds.append("bn_lrelu")
        else:
            layer_kinds.append("lrelu")
        cur_h, cur_c = h_out, c_out

    kernel = _make_dcgan_d_kernel(n, tuple(layer_kinds))
    out = pl.pallas_call(
        kernel,
        out_shape=jax.ShapeDtypeStruct((1, 1), jnp.float32),
        grid=(1,),
        in_specs=in_specs,
        out_specs=pl.BlockSpec((1, 1), lambda i: (0, 0)),
        compiler_params=pltpu.CompilerParams(dimension_semantics=("arbitrary",)),
    )(*operands)
    return out.reshape(1)


# ----------------------------------------------------------------------------
# Pure-JAX reference (correctness sanity check)
# ----------------------------------------------------------------------------
def _reference_forward(params, x):
    x = x.astype(jnp.float32)
    for kind, w, k, stride, pad in params:
        y = jax.lax.conv_general_dilated(
            x, w, window_strides=(stride, stride),
            padding=((pad, pad), (pad, pad)),
            dimension_numbers=("NCHW", "OIHW", "NCHW"))
        if kind == "final":
            return jnp.mean(y, axis=0).reshape(1)
        if kind == "conv_bn_lrelu":
            mean = jnp.mean(y, axis=(0, 2, 3), keepdims=True)
            var = jnp.var(y, axis=(0, 2, 3), keepdims=True)
            y = (y - mean) * jax.lax.rsqrt(var + _BN_EPS)
        x = jnp.where(y >= 0.0, y, _NEG_SLOPE * y)
    raise AssertionError("final layer missing")


if __name__ == "__main__":
    # Small shapes consistent with the module: batch=2, input_nc=4, isize=16, ndf=8
    batch, input_nc, ndf, isize = 2, 4, 8, 16

    key = jax.random.PRNGKey(0)
    key_x, key_p = jax.random.split(key)
    x = jax.random.normal(key_x, (batch, input_nc, isize, isize), jnp.float32)

    params = init_dcgan_d_params(key_p, input_nc, ndf, isize)

    out = jax.block_until_ready(dcgan_d_forward(params, x))
    ref = jax.block_until_ready(_reference_forward(params, x))

    assert out.shape == (1,), out.shape
    assert jnp.allclose(out, ref, rtol=1e-3, atol=1e-3), (out, ref)
    print("KERNEL_OK")
</pallas_src>

<mosaic_0001>
module attributes {stable_mosaic.version = 11 : i64} {
  func.func @kernel(%arg0: i32, %arg1: memref<2x16x64xf32, #tpu.memory_space<vmem>>, %arg2: memref<4x8x16xf32, #tpu.memory_space<vmem>>, %arg3: memref<4x64x64xf32, #tpu.memory_space<vmem>>, %arg4: memref<4x4x8xf32, #tpu.memory_space<vmem>>, %arg5: memref<4x64x64xf32, #tpu.memory_space<vmem>>, %arg6: memref<64x64xf32, #tpu.memory_space<vmem>>, %arg7: memref<4x64xf32, #tpu.memory_space<vmem>>, %arg8: memref<1x1xf32, #tpu.memory_space<vmem>>) attributes {dimension_semantics = [#tpu.dimension_semantics<arbitrary>], iteration_bounds = array<i64: 1>, scalar_prefetch = 0 : i64, scratch_operands = 0 : i64, tpu.core_type = #tpu.core_type<tc>, window_params = [{pipeline_mode = #tpu.pipeline_mode<synchronous>, transform_indices = @transform_0, window_bounds = array<i64: 2, 16, 64>}, {pipeline_mode = #tpu.pipeline_mode<synchronous>, transform_indices = @transform_1, window_bounds = array<i64: 4, 8, 16>}, {pipeline_mode = #tpu.pipeline_mode<synchronous>, transform_indices = @transform_2, window_bounds = array<i64: 4, 64, 64>}, {pipeline_mode = #tpu.pipeline_mode<synchronous>, transform_indices = @transform_3, window_bounds = array<i64: 4, 4, 8>}, {pipeline_mode = #tpu.pipeline_mode<synchronous>, transform_indices = @transform_4, window_bounds = array<i64: 4, 64, 64>}, {pipeline_mode = #tpu.pipeline_mode<synchronous>, transform_indices = @transform_5, window_bounds = array<i64: 64, 64>}, {pipeline_mode = #tpu.pipeline_mode<synchronous>, transform_indices = @transform_6, window_bounds = array<i64: 4, 64>}, {pipeline_mode = #tpu.pipeline_mode<synchronous>, transform_indices = @transform_7, window_bounds = array<i64: 1, 1>}]} {
    %c0 = arith.constant 0 : index
    %c0_0 = arith.constant 0 : index
    %c0_1 = arith.constant 0 : index
    %0 = vector.load %arg1[%c0, %c0_0, %c0_1] : memref<2x16x64xf32, #tpu.memory_space<vmem>>, vector<1x16x64xf32>
    %1 = vector.shape_cast %0 : vector<1x16x64xf32> to vector<16x64xf32>
    %c1 = arith.constant 1 : index
    %c0_2 = arith.constant 0 : index
    %c0_3 = arith.constant 0 : index
    %2 = vector.load %arg1[%c1, %c0_2, %c0_3] : memref<2x16x64xf32, #tpu.memory_space<vmem>>, vector<1x16x64xf32>
    %3 = vector.shape_cast %2 : vector<1x16x64xf32> to vector<16x64xf32>
    %c0_4 = arith.constant 0 : index
    %c0_5 = arith.constant 0 : index
    %c0_6 = arith.constant 0 : index
    %4 = vector.load %arg2[%c0_4, %c0_5, %c0_6] : memref<4x8x16xf32, #tpu.memory_space<vmem>>, vector<1x8x16xf32>
    %5 = vector.shape_cast %4 : vector<1x8x16xf32> to vector<8x16xf32>
    %cst = arith.constant dense<0.000000e+00> : vector<8x64xf32>
    %6 = tpu.matmul %5, %1, %cst {dimension_numbers = #tpu.dot_dimension_numbers<[1], [0], [0], [1], [0, 0, 1, 1], [], []>} : vector<8x16xf32>, vector<16x64xf32>, vector<8x64xf32> -> vector<8x64xf32>
    %c0_7 = arith.constant 0 : index
    %c0_8 = arith.constant 0 : index
    %c0_9 = arith.constant 0 : index
    %7 = vector.load %arg3[%c0_7, %c0_8, %c0_9] : memref<4x64x64xf32, #tpu.memory_space<vmem>>, vector<1x64x64xf32>
    %8 = vector.shape_cast %7 : vector<1x64x64xf32> to vector<64x64xf32>
    %cst_10 = arith.constant dense<0.000000e+00> : vector<8x64xf32>
    %9 = tpu.matmul %6, %8, %cst_10 {dimension_numbers = #tpu.dot_dimension_numbers<[1], [0], [0], [1], [0, 0, 1, 1], [], []>} : vector<8x64xf32>, vector<64x64xf32>, vector<8x64xf32> -> vector<8x64xf32>
    %c1_11 = arith.constant 1 : index
    %c0_12 = arith.constant 0 : index
    %c0_13 = arith.constant 0 : index
    %10 = vector.load %arg2[%c1_11, %c0_12, %c0_13] : memref<4x8x16xf32, #tpu.memory_space<vmem>>, vector<1x8x16xf32>
    %11 = vector.shape_cast %10 : vector<1x8x16xf32> to vector<8x16xf32>
    %cst_14 = arith.constant dense<0.000000e+00> : vector<8x64xf32>
    %12 = tpu.matmul %11, %1, %cst_14 {dimension_numbers = #tpu.dot_dimension_numbers<[1], [0], [0], [1], [0, 0, 1, 1], [], []>} : vector<8x16xf32>, vector<16x64xf32>, vector<8x64xf32> -> vector<8x64xf32>
    %c1_15 = arith.constant 1 : index
    %c0_16 = arith.constant 0 : index
    %c0_17 = arith.constant 0 : index
    %13 = vector.load %arg3[%c1_15, %c0_16, %c0_17] : memref<4x64x64xf32, #tpu.memory_space<vmem>>, vector<1x64x64xf32>
    %14 = vector.shape_cast %13 : vector<1x64x64xf32> to vector<64x64xf32>
    %cst_18 = arith.constant dense<0.000000e+00> : vector<8x64xf32>
    %15 = tpu.matmul %12, %14, %cst_18 {dimension_numbers = #tpu.dot_dimension_numbers<[1], [0], [0], [1], [0, 0, 1, 1], [], []>} : vector<8x64xf32>, vector<64x64xf32>, vector<8x64xf32> -> vector<8x64xf32>
    %16 = arith.addf %9, %15 : vector<8x64xf32>
    %c2 = arith.constant 2 : index
    %c0_19 = arith.constant 0 : index
    %c0_20 = arith.constant 0 : index
    %17 = vector.load %arg2[%c2, %c0_19, %c0_20] : memref<4x8x16xf32, #tpu.memory_space<vmem>>, vector<1x8x16xf32>
    %18 = vector.shape_cast %17 : vector<1x8x16xf32> to vector<8x16xf32>
    %cst_21 = arith.constant dense<0.000000e+00> : vector<8x64xf32>
    %19 = tpu.matmul %18, %1, %cst_21 {dimension_numbers = #tpu.dot_dimension_numbers<[1], [0], [0], [1], [0, 0, 1, 1], [], []>} : vector<8x16xf32>, vector<16x64xf32>, vector<8x64xf32> -> vector<8x64xf32>
    %c2_22 = arith.constant 2 : index
    %c0_23 = arith.constant 0 : index
    %c0_24 = arith.constant 0 : index
    %20 = vector.load %arg3[%c2_22, %c0_23, %c0_24] : memref<4x64x64xf32, #tpu.memory_space<vmem>>, vector<1x64x64xf32>
    %21 = vector.shape_cast %20 : vector<1x64x64xf32> to vector<64x64xf32>
    %cst_25 = arith.constant dense<0.000000e+00> : vector<8x64xf32>
    %22 = tpu.matmul %19, %21, %cst_25 {dimension_numbers = #tpu.dot_dimension_numbers<[1], [0], [0], [1], [0, 0, 1, 1], [], []>} : vector<8x64xf32>, vector<64x64xf32>, vector<8x64xf32> -> vector<8x64xf32>
    %23 = arith.addf %16, %22 : vector<8x64xf32>
    %c3 = arith.constant 3 : index
    %c0_26 = arith.constant 0 : index
    %c0_27 = arith.constant 0 : index
    %24 = vector.load %arg2[%c3, %c0_26, %c0_27] : memref<4x8x16xf32, #tpu.memory_space<vmem>>, vector<1x8x16xf32>
    %25 = vector.shape_cast %24 : vector<1x8x16xf32> to vector<8x16xf32>
    %cst_28 = arith.constant dense<0.000000e+00> : vector<8x64xf32>
    %26 = tpu.matmul %25, %1, %cst_28 {dimension_numbers = #tpu.dot_dimension_numbers<[1], [0], [0], [1], [0, 0, 1, 1], [], []>} : vector<8x16xf32>, vector<16x64xf32>, vector<8x64xf32> -> vector<8x64xf32>
    %c3_29 = arith.constant 3 : index
    %c0_30 = arith.constant 0 : index
    %c0_31 = arith.constant 0 : index
    %27 = vector.load %arg3[%c3_29, %c0_30, %c0_31] : memref<4x64x64xf32, #tpu.memory_space<vmem>>, vector<1x64x64xf32>
    %28 = vector.shape_cast %27 : vector<1x64x64xf32> to vector<64x64xf32>
    %cst_32 = arith.constant dense<0.000000e+00> : vector<8x64xf32>
    %29 = tpu.matmul %26, %28, %cst_32 {dimension_numbers = #tpu.dot_dimension_numbers<[1], [0], [0], [1], [0, 0, 1, 1], [], []>} : vector<8x64xf32>, vector<64x64xf32>, vector<8x64xf32> -> vector<8x64xf32>
    %30 = arith.addf %23, %29 : vector<8x64xf32>
    %c0_33 = arith.constant 0 : index
    %c0_34 = arith.constant 0 : index
    %c0_35 = arith.constant 0 : index
    %31 = vector.load %arg2[%c0_33, %c0_34, %c0_35] : memref<4x8x16xf32, #tpu.memory_space<vmem>>, vector<1x8x16xf32>
    %32 = vector.shape_cast %31 : vector<1x8x16xf32> to vector<8x16xf32>
    %cst_36 = arith.constant dense<0.000000e+00> : vector<8x64xf32>
    %33 = tpu.matmul %32, %3, %cst_36 {dimension_numbers = #tpu.dot_dimension_numbers<[1], [0], [0], [1], [0, 0, 1, 1], [], []>} : vector<8x16xf32>, vector<16x64xf32>, vector<8x64xf32> -> vector<8x64xf32>
    %c0_37 = arith.constant 0 : index
    %c0_38 = arith.constant 0 : index
    %c0_39 = arith.constant 0 : index
    %34 = vector.load %arg3[%c0_37, %c0_38, %c0_39] : memref<4x64x64xf32, #tpu.memory_space<vmem>>, vector<1x64x64xf32>
    %35 = vector.shape_cast %34 : vector<1x64x64xf32> to vector<64x64xf32>
    %cst_40 = arith.constant dense<0.000000e+00> : vector<8x64xf32>
    %36 = tpu.matmul %33, %35, %cst_40 {dimension_numbers = #tpu.dot_dimension_numbers<[1], [0], [0], [1], [0, 0, 1, 1], [], []>} : vector<8x64xf32>, vector<64x64xf32>, vector<8x64xf32> -> vector<8x64xf32>
    %c1_41 = arith.constant 1 : index
    %c0_42 = arith.constant 0 : index
    %c0_43 = arith.constant 0 : index
    %37 = vector.load %arg2[%c1_41, %c0_42, %c0_43] : memref<4x8x16xf32, #tpu.memory_space<vmem>>, vector<1x8x16xf32>
    %38 = vector.shape_cast %37 : vector<1x8x16xf32> to vector<8x16xf32>
    %cst_44 = arith.constant dense<0.000000e+00> : vector<8x64xf32>
    %39 = tpu.matmul %38, %3, %cst_44 {dimension_numbers = #tpu.dot_dimension_numbers<[1], [0], [0], [1], [0, 0, 1, 1], [], []>} : vector<8x16xf32>, vector<16x64xf32>, vector<8x64xf32> -> vector<8x64xf32>
    %c1_45 = arith.constant 1 : index
    %c0_46 = arith.constant 0 : index
    %c0_47 = arith.constant 0 : index
    %40 = vector.load %arg3[%c1_45, %c0_46, %c0_47] : memref<4x64x64xf32, #tpu.memory_space<vmem>>, vector<1x64x64xf32>
    %41 = vector.shape_cast %40 : vector<1x64x64xf32> to vector<64x64xf32>
    %cst_48 = arith.constant dense<0.000000e+00> : vector<8x64xf32>
    %42 = tpu.matmul %39, %41, %cst_48 {dimension_numbers = #tpu.dot_dimension_numbers<[1], [0], [0], [1], [0, 0, 1, 1], [], []>} : vector<8x64xf32>, vector<64x64xf32>, vector<8x64xf32> -> vector<8x64xf32>
    %43 = arith.addf %36, %42 : vector<8x64xf32>
    %c2_49 = arith.constant 2 : index
    %c0_50 = arith.constant 0 : index
    %c0_51 = arith.constant 0 : index
    %44 = vector.load %arg2[%c2_49, %c0_50, %c0_51] : memref<4x8x16xf32, #tpu.memory_space<vmem>>, vector<1x8x16xf32>
    %45 = vector.shape_cast %44 : vector<1x8x16xf32> to vector<8x16xf32>
    %cst_52 = arith.constant dense<0.000000e+00> : vector<8x64xf32>
    %46 = tpu.matmul %45, %3, %cst_52 {dimension_numbers = #tpu.dot_dimension_numbers<[1], [0], [0], [1], [0, 0, 1, 1], [], []>} : vector<8x16xf32>, vector<16x64xf32>, vector<8x64xf32> -> vector<8x64xf32>
    %c2_53 = arith.constant 2 : index
    %c0_54 = arith.constant 0 : index
    %c0_55 = arith.constant 0 : index
    %47 = vector.load %arg3[%c2_53, %c0_54, %c0_55] : memref<4x64x64xf32, #tpu.memory_space<vmem>>, vector<1x64x64xf32>
    %48 = vector.shape_cast %47 : vector<1x64x64xf32> to vector<64x64xf32>
    %cst_56 = arith.constant dense<0.000000e+00> : vector<8x64xf32>
    %49 = tpu.matmul %46, %48, %cst_56 {dimension_numbers = #tpu.dot_dimension_numbers<[1], [0], [0], [1], [0, 0, 1, 1], [], []>} : vector<8x64xf32>, vector<64x64xf32>, vector<8x64xf32> -> vector<8x64xf32>
    %50 = arith.addf %43, %49 : vector<8x64xf32>
    %c3_57 = arith.constant 3 : index
    %c0_58 = arith.constant 0 : index
    %c0_59 = arith.constant 0 : index
    %51 = vector.load %arg2[%c3_57, %c0_58, %c0_59] : memref<4x8x16xf32, #tpu.memory_space<vmem>>, vector<1x8x16xf32>
    %52 = vector.shape_cast %51 : vector<1x8x16xf32> to vector<8x16xf32>
    %cst_60 = arith.constant dense<0.000000e+00> : vector<8x64xf32>
    %53 = tpu.matmul %52, %3, %cst_60 {dimension_numbers = #tpu.dot_dimension_numbers<[1], [0], [0], [1], [0, 0, 1, 1], [], []>} : vector<8x16xf32>, vector<16x64xf32>, vector<8x64xf32> -> vector<8x64xf32>
    %c3_61 = arith.constant 3 : index
    %c0_62 = arith.constant 0 : index
    %c0_63 = arith.constant 0 : index
    %54 = vector.load %arg3[%c3_61, %c0_62, %c0_63] : memref<4x64x64xf32, #tpu.memory_space<vmem>>, vector<1x64x64xf32>
    %55 = vector.shape_cast %54 : vector<1x64x64xf32> to vector<64x64xf32>
    %cst_64 = arith.constant dense<0.000000e+00> : vector<8x64xf32>
    %56 = tpu.matmul %53, %55, %cst_64 {dimension_numbers = #tpu.dot_dimension_numbers<[1], [0], [0], [1], [0, 0, 1, 1], [], []>} : vector<8x64xf32>, vector<64x64xf32>, vector<8x64xf32> -> vector<8x64xf32>
    %57 = arith.addf %50, %56 : vector<8x64xf32>
    %cst_65 = arith.constant 0.000000e+00 : f32
    %58 = vector.broadcast %cst_65 : f32 to vector<8x64xf32>
    %59 = arith.cmpf oge, %30, %58 : vector<8x64xf32>
    %cst_66 = arith.constant 2.000000e-01 : f32
    %60 = vector.broadcast %cst_66 : f32 to vector<8x64xf32>
    %61 = arith.mulf %60, %30 : vector<8x64xf32>
    %62 = arith.select %59, %30, %61 : vector<8x64xi1>, vector<8x64xf32>
    %cst_67 = arith.constant 0.000000e+00 : f32
    %63 = vector.broadcast %cst_67 : f32 to vector<8x64xf32>
    %64 = arith.cmpf oge, %57, %63 : vector<8x64xf32>
    %cst_68 = arith.constant 2.000000e-01 : f32
    %65 = vector.broadcast %cst_68 : f32 to vector<8x64xf32>
    %66 = arith.mulf %65, %57 : vector<8x64xf32>
    %67 = arith.select %64, %57, %66 : vector<8x64xi1>, vector<8x64xf32>
    %c0_69 = arith.constant 0 : index
    %c0_70 = arith.constant 0 : index
    %c0_71 = arith.constant 0 : index
    %68 = vector.load %arg4[%c0_69, %c0_70, %c0_71] : memref<4x4x8xf32, #tpu.memory_space<vmem>>, vector<1x4x8xf32>
    %69 = vector.shape_cast %68 : vector<1x4x8xf32> to vector<4x8xf32>
    %cst_72 = arith.constant dense<0.000000e+00> : vector<4x64xf32>
    %70 = tpu.matmul %69, %62, %cst_72 {dimension_numbers = #tpu.dot_dimension_numbers<[1], [0], [0], [1], [0, 0, 1, 1], [], []>} : vector<4x8xf32>, vector<8x64xf32>, vector<4x64xf32> -> vector<4x64xf32>
    %c0_73 = arith.constant 0 : index
    %c0_74 = arith.constant 0 : index
    %c0_75 = arith.constant 0 : index
    %71 = vector.load %arg5[%c0_73, %c0_74, %c0_75] : memref<4x64x64xf32, #tpu.memory_space<vmem>>, vector<1x64x64xf32>
    %72 = vector.shape_cast %71 : vector<1x64x64xf32> to vector<64x64xf32>
    %cst_76 = arith.constant dense<0.000000e+00> : vector<4x64xf32>
    %73 = tpu.matmul %70, %72, %cst_76 {dimension_numbers = #tpu.dot_dimension_numbers<[1], [0], [0], [1], [0, 0, 1, 1], [], []>} : vector<4x64xf32>, vector<64x64xf32>, vector<4x64xf32> -> vector<4x64xf32>
    %c1_77 = arith.constant 1 : index
    %c0_78 = arith.constant 0 : index
    %c0_79 = arith.constant 0 : index
    %74 = vector.load %arg4[%c1_77, %c0_78, %c0_79] : memref<4x4x8xf32, #tpu.memory_space<vmem>>, vector<1x4x8xf32>
    %75 = vector.shape_cast %74 : vector<1x4x8xf32> to vector<4x8xf32>
    %cst_80 = arith.constant dense<0.000000e+00> : vector<4x64xf32>
    %76 = tpu.matmul %75, %62, %cst_80 {dimension_numbers = #tpu.dot_dimension_numbers<[1], [0], [0], [1], [0, 0, 1, 1], [], []>} : vector<4x8xf32>, vector<8x64xf32>, vector<4x64xf32> -> vector<4x64xf32>
    %c1_81 = arith.constant 1 : index
    %c0_82 = arith.constant 0 : index
    %c0_83 = arith.constant 0 : index
    %77 = vector.load %arg5[%c1_81, %c0_82, %c0_83] : memref<4x64x64xf32, #tpu.memory_space<vmem>>, vector<1x64x64xf32>
    %78 = vector.shape_cast %77 : vector<1x64x64xf32> to vector<64x64xf32>
    %cst_84 = arith.constant dense<0.000000e+00> : vector<4x64xf32>
    %79 = tpu.matmul %76, %78, %cst_84 {dimension_numbers = #tpu.dot_dimension_numbers<[1], [0], [0], [1], [0, 0, 1, 1], [], []>} : vector<4x64xf32>, vector<64x64xf32>, vector<4x64xf32> -> vector<4x64xf32>
    %80 = arith.addf %73, %79 : vector<4x64xf32>
    %c2_85 = arith.constant 2 : index
    %c0_86 = arith.constant 0 : index
    %c0_87 = arith.constant 0 : index
    %81 = vector.load %arg4[%c2_85, %c0_86, %c0_87] : memref<4x4x8xf32, #tpu.memory_space<vmem>>, vector<1x4x8xf32>
    %82 = vector.shape_cast %81 : vector<1x4x8xf32> to vector<4x8xf32>
    %cst_88 = arith.constant dense<0.000000e+00> : vector<4x64xf32>
    %83 = tpu.matmul %82, %62, %cst_88 {dimension_numbers = #tpu.dot_dimension_numbers<[1], [0], [0], [1], [0, 0, 1, 1], [], []>} : vector<4x8xf32>, vector<8x64xf32>, vector<4x64xf32> -> vector<4x64xf32>
    %c2_89 = arith.constant 2 : index
    %c0_90 = arith.constant 0 : index
    %c0_91 = arith.constant 0 : index
    %84 = vector.load %arg5[%c2_89, %c0_90, %c0_91] : memref<4x64x64xf32, #tpu.memory_space<vmem>>, vector<1x64x64xf32>
    %85 = vector.shape_cast %84 : vector<1x64x64xf32> to vector<64x64xf32>
    %cst_92 = arith.constant dense<0.000000e+00> : vector<4x64xf32>
    %86 = tpu.matmul %83, %85, %cst_92 {dimension_numbers = #tpu.dot_dimension_numbers<[1], [0], [0], [1], [0, 0, 1, 1], [], []>} : vector<4x64xf32>, vector<64x64xf32>, vector<4x64xf32> -> vector<4x64xf32>
    %87 = arith.addf %80, %86 : vector<4x64xf32>
    %c3_93 = arith.constant 3 : index
    %c0_94 = arith.constant 0 : index
    %c0_95 = arith.constant 0 : index
    %88 = vector.load %arg4[%c3_93, %c0_94, %c0_95] : memref<4x4x8xf32, #tpu.memory_space<vmem>>, vector<1x4x8xf32>
    %89 = vector.shape_cast %88 : vector<1x4x8xf32> to vector<4x8xf32>
    %cst_96 = arith.constant dense<0.000000e+00> : vector<4x64xf32>
    %90 = tpu.matmul %89, %62, %cst_96 {dimension_numbers = #tpu.dot_dimension_numbers<[1], [0], [0], [1], [0, 0, 1, 1], [], []>} : vector<4x8xf32>, vector<8x64xf32>, vector<4x64xf32> -> vector<4x64xf32>
    %c3_97 = arith.constant 3 : index
    %c0_98 = arith.constant 0 : index
    %c0_99 = arith.constant 0 : index
    %91 = vector.load %arg5[%c3_97, %c0_98, %c0_99] : memref<4x64x64xf32, #tpu.memory_space<vmem>>, vector<1x64x64xf32>
    %92 = vector.shape_cast %91 : vector<1x64x64xf32> to vector<64x64xf32>
    %cst_100 = arith.constant dense<0.000000e+00> : vector<4x64xf32>
    %93 = tpu.matmul %90, %92, %cst_100 {dimension_numbers = #tpu.dot_dimension_numbers<[1], [0], [0], [1], [0, 0, 1, 1], [], []>} : vector<4x64xf32>, vector<64x64xf32>, vector<4x64xf32> -> vector<4x64xf32>
    %94 = arith.addf %87, %93 : vector<4x64xf32>
    %c0_101 = arith.constant 0 : index
    %c0_102 = arith.constant 0 : index
    %c0_103 = arith.constant 0 : index
    %95 = vector.load %arg4[%c0_101, %c0_102, %c0_103] : memref<4x4x8xf32, #tpu.memory_space<vmem>>, vector<1x4x8xf32>
    %96 = vector.shape_cast %95 : vector<1x4x8xf32> to vector<4x8xf32>
    %cst_104 = arith.constant dense<0.000000e+00> : vector<4x64xf32>
    %97 = tpu.matmul %96, %67, %cst_104 {dimension_numbers = #tpu.dot_dimension_numbers<[1], [0], [0], [1], [0, 0, 1, 1], [], []>} : vector<4x8xf32>, vector<8x64xf32>, vector<4x64xf32> -> vector<4x64xf32>
    %c0_105 = arith.constant 0 : index
    %c0_106 = arith.constant 0 : index
    %c0_107 = arith.constant 0 : index
    %98 = vector.load %arg5[%c0_105, %c0_106, %c0_107] : memref<4x64x64xf32, #tpu.memory_space<vmem>>, vector<1x64x64xf32>
    %99 = vector.shape_cast %98 : vector<1x64x64xf32> to vector<64x64xf32>
    %cst_108 = arith.constant dense<0.000000e+00> : vector<4x64xf32>
    %100 = tpu.matmul %97, %99, %cst_108 {dimension_numbers = #tpu.dot_dimension_numbers<[1], [0], [0], [1], [0, 0, 1, 1], [], []>} : vector<4x64xf32>, vector<64x64xf32>, vector<4x64xf32> -> vector<4x64xf32>
    %c1_109 = arith.constant 1 : index
    %c0_110 = arith.constant 0 : index
    %c0_111 = arith.constant 0 : index
    %101 = vector.load %arg4[%c1_109, %c0_110, %c0_111] : memref<4x4x8xf32, #tpu.memory_space<vmem>>, vector<1x4x8xf32>
    %102 = vector.shape_cast %101 : vector<1x4x8xf32> to vector<4x8xf32>
    %cst_112 = arith.constant dense<0.000000e+00> : vector<4x64xf32>
    %103 = tpu.matmul %102, %67, %cst_112 {dimension_numbers = #tpu.dot_dimension_numbers<[1], [0], [0], [1], [0, 0, 1, 1], [], []>} : vector<4x8xf32>, vector<8x64xf32>, vector<4x64xf32> -> vector<4x64xf32>
    %c1_113 = arith.constant 1 : index
    %c0_114 = arith.constant 0 : index
    %c0_115 = arith.constant 0 : index
    %104 = vector.load %arg5[%c1_113, %c0_114, %c0_115] : memref<4x64x64xf32, #tpu.memory_space<vmem>>, vector<1x64x64xf32>
    %105 = vector.shape_cast %104 : vector<1x64x64xf32> to vector<64x64xf32>
    %cst_116 = arith.constant dense<0.000000e+00> : vector<4x64xf32>
    %106 = tpu.matmul %103, %105, %cst_116 {dimension_numbers = #tpu.dot_dimension_numbers<[1], [0], [0], [1], [0, 0, 1, 1], [], []>} : vector<4x64xf32>, vector<64x64xf32>, vector<4x64xf32> -> vector<4x64xf32>
    %107 = arith.addf %100, %106 : vector<4x64xf32>
    %c2_117 = arith.constant 2 : index
    %c0_118 = arith.constant 0 : index
    %c0_119 = arith.constant 0 : index
    %108 = vector.load %arg4[%c2_117, %c0_118, %c0_119] : memref<4x4x8xf32, #tpu.memory_space<vmem>>, vector<1x4x8xf32>
    %109 = vector.shape_cast %108 : vector<1x4x8xf32> to vector<4x8xf32>
    %cst_120 = arith.constant dense<0.000000e+00> : vector<4x64xf32>
    %110 = tpu.matmul %109, %67, %cst_120 {dimension_numbers = #tpu.dot_dimension_numbers<[1], [0], [0], [1], [0, 0, 1, 1], [], []>} : vector<4x8xf32>, vector<8x64xf32>, vector<4x64xf32> -> vector<4x64xf32>
    %c2_121 = arith.constant 2 : index
    %c0_122 = arith.constant 0 : index
    %c0_123 = arith.constant 0 : index
    %111 = vector.load %arg5[%c2_121, %c0_122, %c0_123] : memref<4x64x64xf32, #tpu.memory_space<vmem>>, vector<1x64x64xf32>
    %112 = vector.shape_cast %111 : vector<1x64x64xf32> to vector<64x64xf32>
    %cst_124 = arith.constant dense<0.000000e+00> : vector<4x64xf32>
    %113 = tpu.matmul %110, %112, %cst_124 {dimension_numbers = #tpu.dot_dimension_numbers<[1], [0], [0], [1], [0, 0, 1, 1], [], []>} : vector<4x64xf32>, vector<64x64xf32>, vector<4x64xf32> -> vector<4x64xf32>
    %114 = arith.addf %107, %113 : vector<4x64xf32>
    %c3_125 = arith.constant 3 : index
    %c0_126 = arith.constant 0 : index
    %c0_127 = arith.constant 0 : index
    %115 = vector.load %arg4[%c3_125, %c0_126, %c0_127] : memref<4x4x8xf32, #tpu.memory_space<vmem>>, vector<1x4x8xf32>
    %116 = vector.shape_cast %115 : vector<1x4x8xf32> to vector<4x8xf32>
    %cst_128 = arith.constant dense<0.000000e+00> : vector<4x64xf32>
    %117 = tpu.matmul %116, %67, %cst_128 {dimension_numbers = #tpu.dot_dimension_numbers<[1], [0], [0], [1], [0, 0, 1, 1], [], []>} : vector<4x8xf32>, vector<8x64xf32>, vector<4x64xf32> -> vector<4x64xf32>
    %c3_129 = arith.constant 3 : index
    %c0_130 = arith.constant 0 : index
    %c0_131 = arith.constant 0 : index
    %118 = vector.load %arg5[%c3_129, %c0_130, %c0_131] : memref<4x64x64xf32, #tpu.memory_space<vmem>>, vector<1x64x64xf32>
    %119 = vector.shape_cast %118 : vector<1x64x64xf32> to vector<64x64xf32>
    %cst_132 = arith.constant dense<0.000000e+00> : vector<4x64xf32>
    %120 = tpu.matmul %117, %119, %cst_132 {dimension_numbers = #tpu.dot_dimension_numbers<[1], [0], [0], [1], [0, 0, 1, 1], [], []>} : vector<4x64xf32>, vector<64x64xf32>, vector<4x64xf32> -> vector<4x64xf32>
    %121 = arith.addf %114, %120 : vector<4x64xf32>
    %c0_133 = arith.constant 0 : index
    %c0_134 = arith.constant 0 : index
    %122 = vector.load %arg6[%c0_133, %c0_134] : memref<64x64xf32, #tpu.memory_space<vmem>>, vector<64x64xf32>
    %cst_135 = arith.constant dense<0.000000e+00> : vector<64xf32>
    %123 = vector.multi_reduction <add>, %94, %cst_135 [0] : vector<4x64xf32> to vector<64xf32>
    %124 = vector.shape_cast %123 : vector<64xf32> to vector<1x64xf32>
    %cst_136 = arith.constant dense<0.000000e+00> : vector<64xf32>
    %125 = vector.multi_reduction <add>, %121, %cst_136 [0] : vector<4x64xf32> to vector<64xf32>
    %126 = vector.shape_cast %125 : vector<64xf32> to vector<1x64xf32>
    %127 = arith.addf %124, %126 : vector<1x64xf32>
    %cst_137 = arith.constant dense<0.000000e+00> : vector<1x64xf32>
    %128 = tpu.matmul %127, %122, %cst_137 {dimension_numbers = #tpu.dot_dimension_numbers<[1], [0], [0], [1], [0, 0, 1, 1], [], []>} : vector<1x64xf32>, vector<64x64xf32>, vector<1x64xf32> -> vector<1x64xf32>
    %129 = vector.broadcast %128 : vector<1x64xf32> to vector<4x64xf32>
    %130 = arith.subf %94, %129 : vector<4x64xf32>
    %131 = vector.broadcast %128 : vector<1x64xf32> to vector<4x64xf32>
    %132 = arith.subf %121, %131 : vector<4x64xf32>
    %133 = arith.mulf %130, %130 : vector<4x64xf32>
    %cst_138 = arith.constant dense<0.000000e+00> : vector<64xf32>
    %134 = vector.multi_reduction <add>, %133, %cst_138 [0] : vector<4x64xf32> to vector<64xf32>
    %135 = vector.shape_cast %134 : vector<64xf32> to vector<1x64xf32>
    %136 = arith.mulf %132, %132 : vector<4x64xf32>
    %cst_139 = arith.constant dense<0.000000e+00> : vector<64xf32>
    %137 = vector.multi_reduction <add>, %136, %cst_139 [0] : vector<4x64xf32> to vector<64xf32>
    %138 = vector.shape_cast %137 : vector<64xf32> to vector<1x64xf32>
    %139 = arith.addf %135, %138 : vector<1x64xf32>
    %cst_140 = arith.constant dense<0.000000e+00> : vector<1x64xf32>
    %140 = tpu.matmul %139, %122, %cst_140 {dimension_numbers = #tpu.dot_dimension_numbers<[1], [0], [0], [1], [0, 0, 1, 1], [], []>} : vector<1x64xf32>, vector<64x64xf32>, vector<1x64xf32> -> vector<1x64xf32>
    %cst_141 = arith.constant 9.99999974E-6 : f32
    %141 = vector.broadcast %cst_141 : f32 to vector<1x64xf32>
    %142 = arith.addf %140, %141 : vector<1x64xf32>
    %143 = math.rsqrt %142 : vector<1x64xf32>
    %cst_142 = arith.constant 0.000000e+00 : f32
    %144 = vector.broadcast %cst_142 : f32 to vector<4x64xf32>
    %145 = arith.cmpf oge, %130, %144 : vector<4x64xf32>
    %cst_143 = arith.constant 2.000000e-01 : f32
    %146 = vector.broadcast %cst_143 : f32 to vector<4x64xf32>
    %147 = arith.mulf %146, %130 : vector<4x64xf32>
    %148 = arith.select %145, %130, %147 : vector<4x64xi1>, vector<4x64xf32>
    %149 = vector.broadcast %143 : vector<1x64xf32> to vector<4x64xf32>
    %150 = arith.mulf %148, %149 : vector<4x64xf32>
    %cst_144 = arith.constant 0.000000e+00 : f32
    %151 = vector.broadcast %cst_144 : f32 to vector<4x64xf32>
    %152 = arith.cmpf oge, %132, %151 : vector<4x64xf32>
    %cst_145 = arith.constant 2.000000e-01 : f32
    %153 = vector.broadcast %cst_145 : f32 to vector<4x64xf32>
    %154 = arith.mulf %153, %132 : vector<4x64xf32>
    %155 = arith.select %152, %132, %154 : vector<4x64xi1>, vector<4x64xf32>
    %156 = vector.broadcast %143 : vector<1x64xf32> to vector<4x64xf32>
    %157 = arith.mulf %155, %156 : vector<4x64xf32>
    %c0_146 = arith.constant 0 : index
    %c0_147 = arith.constant 0 : index
    %158 = vector.load %arg7[%c0_146, %c0_147] : memref<4x64xf32, #tpu.memory_space<vmem>>, vector<4x64xf32>
    %159 = arith.mulf %150, %158 : vector<4x64xf32>
    %cst_148 = arith.constant dense<0.000000e+00> : vector<4xf32>
    %160 = vector.multi_reduction <add>, %159, %cst_148 [1] : vector<4x64xf32> to vector<4xf32>
    %161 = vector.shape_cast %160 : vector<4xf32> to vector<4x1xf32>
    %cst_149 = arith.constant dense<0.000000e+00> : vector<1xf32>
    %162 = vector.multi_reduction <add>, %161, %cst_149 [0] : vector<4x1xf32> to vector<1xf32>
    %163 = vector.shape_cast %162 : vector<1xf32> to vector<1x1xf32>
    %164 = arith.mulf %157, %158 : vector<4x64xf32>
    %cst_150 = arith.constant dense<0.000000e+00> : vector<4xf32>
    %165 = vector.multi_reduction <add>, %164, %cst_150 [1] : vector<4x64xf32> to vector<4xf32>
    %166 = vector.shape_cast %165 : vector<4xf32> to vector<4x1xf32>
    %cst_151 = arith.constant dense<0.000000e+00> : vector<1xf32>
    %167 = vector.multi_reduction <add>, %166, %cst_151 [0] : vector<4x1xf32> to vector<1xf32>
    %168 = vector.shape_cast %167 : vector<1xf32> to vector<1x1xf32>
    %169 = arith.addf %163, %168 : vector<1x1xf32>
    %c0_152 = arith.constant 0 : index
    %c0_153 = arith.constant 0 : index
    %170 = vector.load %arg8[%c0_152, %c0_153] : memref<1x1xf32, #tpu.memory_space<vmem>>, vector<1x1xf32>
    tpu.vector_store %arg8[%c0_152, %c0_153], %169 {strides = array<i32>} : memref<1x1xf32, #tpu.memory_space<vmem>>, vector<1x1xf32>,
    return
  }
  func.func @transform_0(%arg0: i32) -> (i32, i32, i32) {
    %c0_i32 = arith.constant 0 : i32
    %c0_i32_0 = arith.constant 0 : i32
    %c0_i32_1 = arith.constant 0 : i32
    %c0_i32_2 = arith.constant 0 : i32
    return %c0_i32, %c0_i32_0, %c0_i32_1 : i32, i32, i32
  }
  func.func @transform_1(%arg0: i32) -> (i32, i32, i32) {
    %c0_i32 = arith.constant 0 : i32
    %c0_i32_0 = arith.constant 0 : i32
    %c0_i32_1 = arith.constant 0 : i32
    %c0_i32_2 = arith.constant 0 : i32
    return %c0_i32, %c0_i32_0, %c0_i32_1 : i32, i32, i32
  }
  func.func @transform_2(%arg0: i32) -> (i32, i32, i32) {
    %c0_i32 = arith.constant 0 : i32
    %c0_i32_0 = arith.constant 0 : i32
    %c0_i32_1 = arith.constant 0 : i32
    %c0_i32_2 = arith.constant 0 : i32
    return %c0_i32, %c0_i32_0, %c0_i32_1 : i32, i32, i32
  }
  func.func @transform_3(%arg0: i32) -> (i32, i32, i32) {
    %c0_i32 = arith.constant 0 : i32
    %c0_i32_0 = arith.constant 0 : i32
    %c0_i32_1 = arith.constant 0 : i32
    %c0_i32_2 = arith.constant 0 : i32
    return %c0_i32, %c0_i32_0, %c0_i32_1 : i32, i32, i32
  }
  func.func @transform_4(%arg0: i32) -> (i32, i32, i32) {
    %c0_i32 = arith.constant 0 : i32
    %c0_i32_0 = arith.constant 0 : i32
    %c0_i32_1 = arith.constant 0 : i32
    %c0_i32_2 = arith.constant 0 : i32
    return %c0_i32, %c0_i32_0, %c0_i32_1 : i32, i32, i32
  }
  func.func @transform_5(%arg0: i32) -> (i32, i32) {
    %c0_i32 = arith.constant 0 : i32
    %c0_i32_0 = arith.constant 0 : i32
    %c0_i32_1 = arith.constant 0 : i32
    return %c0_i32, %c0_i32_0 : i32, i32
  }
  func.func @transform_6(%arg0: i32) -> (i32, i32) {
    %c0_i32 = arith.constant 0 : i32
    %c0_i32_0 = arith.constant 0 : i32
    %c0_i32_1 = arith.constant 0 : i32
    return %c0_i32, %c0_i32_0 : i32, i32
  }
  func.func @transform_7(%arg0: i32) -> (i32, i32) {
    %c0_i32 = arith.constant 0 : i32
    %c0_i32_0 = arith.constant 0 : i32
    %c0_i32_1 = arith.constant 0 : i32
    return %c0_i32, %c0_i32_0 : i32, i32
  }
}

</mosaic_0001>

<llo_original>
// kernel: tpu_custom_call.1
$region0: #{tpu_custom_call.1}
  #allocation0 [shape = 'u32[]', space=smem, size = 0x4, offset = 0x4, fixed_abs, tag = 'smem constant byte address 0x4 - core index']
  #allocation1 [shape = 'u32[72,128]{1,0:T(1,128)}', space=vmem, size = 0x9000, scoped, tag = 'internal scratch']
  %s0 = inlined_call_operand.hbm [shape: f32[2,16,64], index: 0, kind: input, shape index: {}]
  %s1 = inlined_call_operand.hbm [shape: f32[4,8,16], index: 1, kind: input, shape index: {}]
  %s2 = inlined_call_operand.hbm [shape: f32[4,64,64], index: 2, kind: input, shape index: {}]
  %s3 = inlined_call_operand.hbm [shape: f32[4,4,8], index: 3, kind: input, shape index: {}]
  %s4 = inlined_call_operand.hbm [shape: f32[4,64,64], index: 4, kind: input, shape index: {}]
  %s5 = inlined_call_operand.hbm [shape: f32[64,64], index: 5, kind: input, shape index: {}]
  %s6 = inlined_call_operand.vmem [shape: f32[4,64], index: 6, kind: input, shape index: {}]
  %s7 = inlined_call_operand.hbm [shape: f32[1,1], index: 7, kind: output, shape index: {}]
  %s8 = sld [smem:[#allocation0]]
  $region62: #{tpu_custom_call.1} parent=0
    _
  %s10 = ssub.s32 1, %s8
  %s11 = scalar_select 0, %s10, %s8
  $region1: #{tpu_custom_call.1} parent=0
    #allocation2 [shape = 'u8[16384]{0}', space=vmem, size = 0x4000, scoped, tag = 'input window, operand 0, single buffered']
    #allocation3 [shape = 's32[1]{0}', space=sflag, size = 0x4, scoped, tag = 'scoped memory for tpu_custom_call.1']
    #allocation4 [shape = 's32[1]{0}', space=sflag, size = 0x4, scoped, tag = 'scoped memory for tpu_custom_call.1']
    #allocation5 [shape = 'u8[16384]{0}', space=vmem, size = 0x4000, scoped, tag = 'input window, operand 1, single buffered']
    #allocation6 [shape = 's32[1]{0}', space=sflag, size = 0x4, scoped, tag = 'scoped memory for tpu_custom_call.1']
    #allocation7 [shape = 'u8[131072]{0}', space=vmem, size = 0x20000, scoped, tag = 'input window, operand 2, single buffered']
    #allocation8 [shape = 'u8[8192]{0}', space=vmem, size = 0x2000, scoped, tag = 'input window, operand 3, single buffered']
    #allocation9 [shape = 's32[1]{0}', space=sflag, size = 0x4, scoped, tag = 'scoped memory for tpu_custom_call.1']
    #allocation10 [shape = 'u8[131072]{0}', space=vmem, size = 0x20000, scoped, tag = 'input window, operand 4, single buffered']
    #allocation11 [shape = 'u8[32768]{0}', space=vmem, size = 0x8000, scoped, tag = 'input window, operand 5, single buffered']
    #allocation12 [shape = 's32[1]{0}', space=sflag, size = 0x4, scoped, tag = 'scoped memory for tpu_custom_call.1']
    #allocation13 [shape = 'u8[512]{0}', space=vmem, size = 0x400, scoped, tag = 'output window, operand 0, single buffered']
    %12 = vsyncpa [#allocation3], 0
    %13 = vsyncpa [#allocation6], 0
    %14 = vsyncpa [#allocation9], 0
    %15 = vsyncpa [#allocation12], 0
    %16 = vsyncpa [#allocation4], 0
    // Predicated region
    $region2: #{tpu_custom_call.1} parent=1 // pred_check
      _
    $region3: #{tpu_custom_call.1} parent=1 // pred_check_branch
      %18 = sbr.rel (0) target = $region5
    $region4: #{tpu_custom_call.1} parent=1 // pred_region
      %20 = vsyncadd [#allocation3], 0
      %s21 = sshll.u32 %s0, 4
      %s22 = int_to_ptr.hbm [resolvable:$true] %s21
      %s23 = sshll.u32 [#allocation2], 4
      %s24 = int_to_ptr.vmem [resolvable:$true] %s23
      %29 = dma.hbm_to_vmem [thread:$0]  %s22, 512, %s24, [#allocation3], 128, 128, 8
    $region5: #{tpu_custom_call.1} parent=1 // pred_fallthru
      _
    // Predicated region
    $region6: #{tpu_custom_call.1} parent=1 // pred_check
      _
    $region7: #{tpu_custom_call.1} parent=1 // pred_check_branch
      %31 = sbr.rel (0) target = $region9
    $region8: #{tpu_custom_call.1} parent=1 // pred_region
      %33 = vsyncadd [#allocation6], 0
      %s34 = sshll.u32 %s1, 4
      %s35 = int_to_ptr.hbm [resolvable:$true] %s34
      %s36 = sshll.u32 [#allocation5], 4
      %s37 = int_to_ptr.vmem [resolvable:$true] %s36
      %42 = dma.hbm_to_vmem [thread:$0]  %s35, 512, %s37, [#allocation6], 128, 128, 8
    $region9: #{tpu_custom_call.1} parent=1 // pred_fallthru
      _
    // Predicated region
    $region10: #{tpu_custom_call.1} parent=1 // pred_check
      _
    $region11: #{tpu_custom_call.1} parent=1 // pred_check_branch
      %44 = sbr.rel (0) target = $region13
    $region12: #{tpu_custom_call.1} parent=1 // pred_region
      %46 = vsyncadd [#allocation6], 0
      %s47 = sshll.u32 %s2, 4
      %s48 = int_to_ptr.hbm [resolvable:$true] %s47
      %s49 = sshll.u32 [#allocation7], 4
      %s50 = int_to_ptr.vmem [resolvable:$true] %s49
      %55 = dma.hbm_to_vmem [thread:$0]  %s48, 4096, %s50, [#allocation6], 128, 128, 8
    $region13: #{tpu_custom_call.1} parent=1 // pred_fallthru
      _
    // Predicated region
    $region14: #{tpu_custom_call.1} parent=1 // pred_check
      _
    $region15: #{tpu_custom_call.1} parent=1 // pred_check_branch
      %57 = sbr.rel (0) target = $region17
    $region16: #{tpu_custom_call.1} parent=1 // pred_region
      %59 = vsyncadd [#allocation9], 0
      %s60 = sshll.u32 %s3, 4
      %s61 = int_to_ptr.hbm [resolvable:$true] %s60
      %s62 = sshll.u32 [#allocation8], 4
      %s63 = int_to_ptr.vmem [resolvable:$true] %s62
      %68 = dma.hbm_to_vmem [thread:$0]  %s61, 256, %s63, [#allocation9], 64, 64, 4
    $region17: #{tpu_custom_call.1} parent=1 // pred_fallthru
      _
    // Predicated region
    $region18: #{tpu_custom_call.1} parent=1 // pred_check
      _
    $region19: #{tpu_custom_call.1} parent=1 // pred_check_branch
      %70 = sbr.rel (0) target = $region21
    $region20: #{tpu_custom_call.1} parent=1 // pred_region
      %72 = vsyncadd [#allocation9], 0
      %s73 = sshll.u32 %s4, 4
      %s74 = int_to_ptr.hbm [resolvable:$true] %s73
      %s75 = sshll.u32 [#allocation10], 4
      %s76 = int_to_ptr.vmem [resolvable:$true] %s75
      %81 = dma.hbm_to_vmem [thread:$0]  %s74, 4096, %s76, [#allocation9], 128, 128, 8
    $region21: #{tpu_custom_call.1} parent=1 // pred_fallthru
      _
    // Predicated region
    $region22: #{tpu_custom_call.1} parent=1 // pred_check
      _
    $region23: #{tpu_custom_call.1} parent=1 // pred_check_branch
      %83 = sbr.rel (0) target = $region25
    $region24: #{tpu_custom_call.1} parent=1 // pred_region
      %85 = vsyncadd [#allocation12], 0
      %s86 = sshll.u32 %s5, 4
      %s87 = int_to_ptr.hbm [resolvable:$true] %s86
      %s88 = sshll.u32 [#allocation11], 4
      %s89 = int_to_ptr.vmem [resolvable:$true] %s88
      %94 = dma.hbm_to_vmem [thread:$0]  %s87, 1024, %s89, [#allocation12], 128, 128, 8
    $region25: #{tpu_custom_call.1} parent=1 // pred_fallthru
      _
    // Predicated region
    $region26: #{tpu_custom_call.1} parent=1 // pred_check
      _
    $region27: #{tpu_custom_call.1} parent=1 // pred_check_branch
      %96 = sbr.rel (0) target = $region29
    $region28: #{tpu_custom_call.1} parent=1 // pred_region
      _
    $region29: #{tpu_custom_call.1} parent=1 // pred_fallthru
      _
    // Predicated region
    $region30: #{tpu_custom_call.1} parent=1 // pred_check
      _
    $region31: #{tpu_custom_call.1} parent=1 // pred_check_branch
      %98 = sbr.rel (0) target = $region33
    $region32: #{tpu_custom_call.1} parent=1 // pred_region
      %100 = dma.done [#allocation3], 512
    $region33: #{tpu_custom_call.1} parent=1 // pred_fallthru
      _
    // Predicated region
    $region34: #{tpu_custom_call.1} parent=1 // pred_check
      _
    $region35: #{tpu_custom_call.1} parent=1 // pred_check_branch
      %102 = sbr.rel (0) target = $region37
    $region36: #{tpu_custom_call.1} parent=1 // pred_region
      %104 = dma.done [#allocation6], 512
    $region37: #{tpu_custom_call.1} parent=1 // pred_fallthru
      _
    // Predicated region
    $region38: #{tpu_custom_call.1} parent=1 // pred_check
      _
    $region39: #{tpu_custom_call.1} parent=1 // pred_check_branch
      %106 = sbr.rel (0) target = $region41
    $region40: #{tpu_custom_call.1} parent=1 // pred_region
      %108 = dma.done [#allocation6], 4096
    $region41: #{tpu_custom_call.1} parent=1 // pred_fallthru
      _
    // Predicated region
    $region42: #{tpu_custom_call.1} parent=1 // pred_check
      _
    $region43: #{tpu_custom_call.1} parent=1 // pred_check_branch
      %110 = sbr.rel (0) target = $region45
    $region44: #{tpu_custom_call.1} parent=1 // pred_region
      %112 = dma.done [#allocation9], 256
    $region45: #{tpu_custom_call.1} parent=1 // pred_fallthru
      _
    // Predicated region
    $region46: #{tpu_custom_call.1} parent=1 // pred_check
      _
    $region47: #{tpu_custom_call.1} parent=1 // pred_check_branch
      %114 = sbr.rel (0) target = $region49
    $region48: #{tpu_custom_call.1} parent=1 // pred_region
      %116 = dma.done [#allocation9], 4096
    $region49: #{tpu_custom_call.1} parent=1 // pred_fallthru
      _
    // Predicated region
    $region50: #{tpu_custom_call.1} parent=1 // pred_check
      _
    $region51: #{tpu_custom_call.1} parent=1 // pred_check_branch
      %118 = sbr.rel (0) target = $region53
    $region52: #{tpu_custom_call.1} parent=1 // pred_region
      %120 = dma.done [#allocation12], 1024
    $region53: #{tpu_custom_call.1} parent=1 // pred_fallthru
      _
    %v121 = vld [vmem:[#allocation2] sm:$0xff]
    %v122 = vld [vmem:[#allocation2 + $0x8] sm:$0xff]
    %s123 = scalar_lea.vmem [#allocation2], 16
    %v124 = vld [vmem:[%s123] sm:$0xff]
    %v125 = vld [vmem:[%s123 + $0x8] sm:$0xff]
    %v126 = vld [vmem:[#allocation5] sm:$0xff]
    %vm127 = vcmask 130048
    %v129 = vsel %vm127, %v126, 0
    %131 = vmatpush.msra.mxu0 0.0
    %132 = vmatpush.msra.mxu0 0.0
    %133 = vmatpush.msra.mxu0 0.0
    %134 = vmatpush.msra.mxu0 0.0
    %135 = vmatpush.msra.mxu0 0.0
    %136 = vmatpush.msra.mxu0 0.0
    %137 = vmatpush.msra.mxu0 0.0
    %138 = vmatpush.msra.mxu0 0.0
    %139 = vmatpush.msra.mxu0 0.0
    %140 = vmatpush.msra.mxu0 0.0
    %141 = vmatpush.msra.mxu0 0.0
    %142 = vmatpush.msra.mxu0 0.0
    %143 = vmatpush.msra.mxu0 0.0
    %144 = vmatpush.msra.mxu0 0.0
    %145 = vmatpush.msra.mxu0 %v122
    %146 = vmatpush.msra.mxu0 %v121
    %147 = vmatmul.f32.gmra.mxu0 %v129
    %v148 = vpop.f32.mrf.mxu0
    %v149 = vadd.f32 0.0, %v148
    %150 = vdwg.mxu0
    %v151 = vld [vmem:[#allocation7] sm:$0xff]
    %v152 = vld [vmem:[#allocation7 + $0x8] sm:$0xff]
    %v153 = vld [vmem:[#allocation7 + $0x10] sm:$0xff]
    %v154 = vld [vmem:[#allocation7 + $0x18] sm:$0xff]
    %v155 = vld [vmem:[#allocation7 + $0x20] sm:$0xff]
    %v156 = vld [vmem:[#allocation7 + $0x28] sm:$0xff]
    %v157 = vld [vmem:[#allocation7 + $0x30] sm:$0xff]
    %v158 = vld [vmem:[#allocation7 + $0x38] sm:$0xff]
    %s159 = scalar_lea.vmem [#allocation5], 8
    %v160 = vld [vmem:[%s159] sm:$0xff]
    %v162 = vsel %vm127, %v160, 0
    %164 = vmatpush.msra.mxu0 0.0
    %165 = vmatpush.msra.mxu0 0.0
    %166 = vmatpush.msra.mxu0 0.0
    %167 = vmatpush.msra.mxu0 0.0
    %168 = vmatpush.msra.mxu0 0.0
    %169 = vmatpush.msra.mxu0 0.0
    %170 = vmatpush.msra.mxu0 0.0
    %171 = vmatpush.msra.mxu0 0.0
    %172 = vmatpush.msra.mxu0 0.0
    %173 = vmatpush.msra.mxu0 0.0
    %174 = vmatpush.msra.mxu0 0.0
    %175 = vmatpush.msra.mxu0 0.0
    %176 = vmatpush.msra.mxu0 0.0
    %177 = vmatpush.msra.mxu0 0.0
    %178 = vmatpush.msra.mxu0 %v122
    %179 = vmatpush.msra.mxu0 %v121
    %180 = vmatmul.f32.gmra.mxu0 %v162
    %v181 = vpop.f32.mrf.mxu0
    %v182 = vadd.f32 0.0, %v181
    %183 = vdwg.mxu0
    %s184 = scalar_lea.vmem [#allocation7], 64
    %v185 = vld [vmem:[%s184] sm:$0xff]
    %v186 = vld [vmem:[%s184 + $0x8] sm:$0xff]
    %v187 = vld [vmem:[%s184 + $0x10] sm:$0xff]
    %v188 = vld [vmem:[%s184 + $0x18] sm:$0xff]
    %v189 = vld [vmem:[%s184 + $0x20] sm:$0xff]
    %v190 = vld [vmem:[%s184 + $0x28] sm:$0xff]
    %v191 = vld [vmem:[%s184 + $0x30] sm:$0xff]
    %v192 = vld [vmem:[%s184 + $0x38] sm:$0xff]
    %vm193 = vcmask 523264
    %v195 = vsel %vm193, %v182, 0
    %197 = vmatpush.msra.mxu0 0.0
    %198 = vmatpush.msra.mxu0 0.0
    %199 = vmatpush.msra.mxu0 0.0
    %200 = vmatpush.msra.mxu0 0.0
    %201 = vmatpush.msra.mxu0 0.0
    %202 = vmatpush.msra.mxu0 0.0
    %203 = vmatpush.msra.mxu0 0.0
    %204 = vmatpush.msra.mxu0 0.0
    %205 = vmatpush.msra.mxu0 %v192
    %206 = vmatpush.msra.mxu0 %v191
    %207 = vmatpush.msra.mxu0 %v190
    %208 = vmatpush.msra.mxu0 %v189
    %209 = vmatpush.msra.mxu0 %v188
    %210 = vmatpush.msra.mxu0 %v187
    %211 = vmatpush.msra.mxu0 %v186
    %212 = vmatpush.msra.mxu0 %v185
    %213 = vmatmul.f32.gmra.mxu0 %v195
    %v214 = vpop.f32.mrf.mxu0
    %v215 = vadd.f32 0.0, %v214
    %216 = vdwg.mxu0
    %v218 = vsel %vm193, %v149, 0
    %220 = vmatpush.msra.mxu0 0.0
    %221 = vmatpush.msra.mxu0 0.0
    %222 = vmatpush.msra.mxu0 0.0
    %223 = vmatpush.msra.mxu0 0.0
    %224 = vmatpush.msra.mxu0 0.0
    %225 = vmatpush.msra.mxu0 0.0
    %226 = vmatpush.msra.mxu0 0.0
    %227 = vmatpush.msra.mxu0 0.0
    %228 = vmatpush.msra.mxu0 %v158
    %229 = vmatpush.msra.mxu0 %v157
    %230 = vmatpush.msra.mxu0 %v156
    %231 = vmatpush.msra.mxu0 %v155
    %232 = vmatpush.msra.mxu0 %v154
    %233 = vmatpush.msra.mxu0 %v153
    %234 = vmatpush.msra.mxu0 %v152
    %235 = vmatpush.msra.mxu0 %v151
    %236 = vmatmul.f32.gmra.mxu0 %v218
    %v237 = vpop.f32.mrf.mxu0
    %v238 = vadd.f32 %v215, %v237
    %239 = vdwg.mxu0
    %s240 = scalar_lea.vmem [#allocation5], 16
    %v241 = vld [vmem:[%s240] sm:$0xff]
    %v243 = vsel %vm127, %v241, 0
    %245 = vmatpush.msra.mxu0 0.0
    %246 = vmatpush.msra.mxu0 0.0
    %247 = vmatpush.msra.mxu0 0.0
    %248 = vmatpush.msra.mxu0 0.0
    %249 = vmatpush.msra.mxu0 0.0
    %250 = vmatpush.msra.mxu0 0.0
    %251 = vmatpush.msra.mxu0 0.0
    %252 = vmatpush.msra.mxu0 0.0
    %253 = vmatpush.msra.mxu0 0.0
    %254 = vmatpush.msra.mxu0 0.0
    %255 = vmatpush.msra.mxu0 0.0
    %256 = vmatpush.msra.mxu0 0.0
    %257 = vmatpush.msra.mxu0 0.0
    %258 = vmatpush.msra.mxu0 0.0
    %259 = vmatpush.msra.mxu0 %v122
    %260 = vmatpush.msra.mxu0 %v121
    %261 = vmatmul.f32.gmra.mxu0 %v243
    %v262 = vpop.f32.mrf.mxu0
    %v263 = vadd.f32 0.0, %v262
    %264 = vdwg.mxu0
    %s265 = scalar_lea.vmem [#allocation7], 128
    %v266 = vld [vmem:[%s265] sm:$0xff]
    %v267 = vld [vmem:[%s265 + $0x8] sm:$0xff]
    %v268 = vld [vmem:[%s265 + $0x10] sm:$0xff]
    %v269 = vld [vmem:[%s265 + $0x18] sm:$0xff]
    %v270 = vld [vmem:[%s265 + $0x20] sm:$0xff]
    %v271 = vld [vmem:[%s265 + $0x28] sm:$0xff]
    %v272 = vld [vmem:[%s265 + $0x30] sm:$0xff]
    %v273 = vld [vmem:[%s265 + $0x38] sm:$0xff]
    %v275 = vsel %vm193, %v263, 0
    %277 = vmatpush.msra.mxu0 0.0
    %278 = vmatpush.msra.mxu0 0.0
    %279 = vmatpush.msra.mxu0 0.0
    %280 = vmatpush.msra.mxu0 0.0
    %281 = vmatpush.msra.mxu0 0.0
    %282 = vmatpush.msra.mxu0 0.0
    %283 = vmatpush.msra.mxu0 0.0
    %284 = vmatpush.msra.mxu0 0.0
    %285 = vmatpush.msra.mxu0 %v273
    %286 = vmatpush.msra.mxu0 %v272
    %287 = vmatpush.msra.mxu0 %v271
    %288 = vmatpush.msra.mxu0 %v270
    %289 = vmatpush.msra.mxu0 %v269
    %290 = vmatpush.msra.mxu0 %v268
    %291 = vmatpush.msra.mxu0 %v267
    %292 = vmatpush.msra.mxu0 %v266
    %293 = vmatmul.f32.gmra.mxu0 %v275
    %v294 = vpop.f32.mrf.mxu0
    %v295 = vadd.f32 0.0, %v294
    %296 = vdwg.mxu0
    %v297 = vadd.f32 %v238, %v295
    %s298 = scalar_lea.vmem [#allocation5], 24
    %v299 = vld [vmem:[%s298] sm:$0xff]
    %v301 = vsel %vm127, %v299, 0
    %303 = vmatpush.msra.mxu0 0.0
    %304 = vmatpush.msra.mxu0 0.0
    %305 = vmatpush.msra.mxu0 0.0
    %306 = vmatpush.msra.mxu0 0.0
    %307 = vmatpush.msra.mxu0 0.0
    %308 = vmatpush.msra.mxu0 0.0
    %309 = vmatpush.msra.mxu0 0.0
    %310 = vmatpush.msra.mxu0 0.0
    %311 = vmatpush.msra.mxu0 0.0
    %312 = vmatpush.msra.mxu0 0.0
    %313 = vmatpush.msra.mxu0 0.0
    %314 = vmatpush.msra.mxu0 0.0
    %315 = vmatpush.msra.mxu0 0.0
    %316 = vmatpush.msra.mxu0 0.0
    %317 = vmatpush.msra.mxu0 %v122
    %318 = vmatpush.msra.mxu0 %v121
    %319 = vmatmul.f32.gmra.mxu0 %v301
    %v320 = vpop.f32.mrf.mxu0
    %v321 = vadd.f32 0.0, %v320
    %322 = vdwg.mxu0
    %s323 = scalar_lea.vmem [#allocation7], 192
    %v324 = vld [vmem:[%s323] sm:$0xff]
    %v325 = vld [vmem:[%s323 + $0x8] sm:$0xff]
    %v326 = vld [vmem:[%s323 + $0x10] sm:$0xff]
    %v327 = vld [vmem:[%s323 + $0x18] sm:$0xff]
    %v328 = vld [vmem:[%s323 + $0x20] sm:$0xff]
    %v329 = vld [vmem:[%s323 + $0x28] sm:$0xff]
    %v330 = vld [vmem:[%s323 + $0x30] sm:$0xff]
    %v331 = vld [vmem:[%s323 + $0x38] sm:$0xff]
    %v333 = vsel %vm193, %v321, 0
    %335 = vmatpush.msra.mxu0 0.0
    %336 = vmatpush.msra.mxu0 0.0
    %337 = vmatpush.msra.mxu0 0.0
    %338 = vmatpush.msra.mxu0 0.0
    %339 = vmatpush.msra.mxu0 0.0
    %340 = vmatpush.msra.mxu0 0.0
    %341 = vmatpush.msra.mxu0 0.0
    %342 = vmatpush.msra.mxu0 0.0
    %343 = vmatpush.msra.mxu0 %v331
    %344 = vmatpush.msra.mxu0 %v330
    %345 = vmatpush.msra.mxu0 %v329
    %346 = vmatpush.msra.mxu0 %v328
    %347 = vmatpush.msra.mxu0 %v327
    %348 = vmatpush.msra.mxu0 %v326
    %349 = vmatpush.msra.mxu0 %v325
    %350 = vmatpush.msra.mxu0 %v324
    %351 = vmatmul.f32.gmra.mxu0 %v333
    %v352 = vpop.f32.mrf.mxu0
    %v353 = vadd.f32 0.0, %v352
    %354 = vdwg.mxu0
    %v355 = vadd.f32 %v297, %v353
    %356 = vmatpush.msra.mxu0 0.0
    %357 = vmatpush.msra.mxu0 0.0
    %358 = vmatpush.msra.mxu0 0.0
    %359 = vmatpush.msra.mxu0 0.0
    %360 = vmatpush.msra.mxu0 0.0
    %361 = vmatpush.msra.mxu0 0.0
    %362 = vmatpush.msra.mxu0 0.0
    %363 = vmatpush.msra.mxu0 0.0
    %364 = vmatpush.msra.mxu0 0.0
    %365 = vmatpush.msra.mxu0 0.0
    %366 = vmatpush.msra.mxu0 0.0
    %367 = vmatpush.msra.mxu0 0.0
    %368 = vmatpush.msra.mxu0 0.0
    %369 = vmatpush.msra.mxu0 0.0
    %370 = vmatpush.msra.mxu0 %v125
    %371 = vmatpush.msra.mxu0 %v124
    %372 = vmatmul.f32.gmra.mxu0 %v129
    %v373 = vpop.f32.mrf.mxu0
    %v374 = vadd.f32 0.0, %v373
    %375 = vdwg.mxu0
    %376 = vmatpush.msra.mxu0 0.0
    %377 = vmatpush.msra.mxu0 0.0
    %378 = vmatpush.msra.mxu0 0.0
    %379 = vmatpush.msra.mxu0 0.0
    %380 = vmatpush.msra.mxu0 0.0
    %381 = vmatpush.msra.mxu0 0.0
    %382 = vmatpush.msra.mxu0 0.0
    %383 = vmatpush.msra.mxu0 0.0
    %384 = vmatpush.msra.mxu0 0.0
    %385 = vmatpush.msra.mxu0 0.0
    %386 = vmatpush.msra.mxu0 0.0
    %387 = vmatpush.msra.mxu0 0.0
    %388 = vmatpush.msra.mxu0 0.0
    %389 = vmatpush.msra.mxu0 0.0
    %390 = vmatpush.msra.mxu0 %v125
    %391 = vmatpush.msra.mxu0 %v124
    %392 = vmatmul.f32.gmra.mxu0 %v162
    %v393 = vpop.f32.mrf.mxu0
    %v394 = vadd.f32 0.0, %v393
    %395 = vdwg.mxu0
    %v397 = vsel %vm193, %v394, 0
    %399 = vmatpush.msra.mxu0 0.0
    %400 = vmatpush.msra.mxu0 0.0
    %401 = vmatpush.msra.mxu0 0.0
    %402 = vmatpush.msra.mxu0 0.0
    %403 = vmatpush.msra.mxu0 0.0
    %404 = vmatpush.msra.mxu0 0.0
    %405 = vmatpush.msra.mxu0 0.0
    %406 = vmatpush.msra.mxu0 0.0
    %407 = vmatpush.msra.mxu0 %v192
    %408 = vmatpush.msra.mxu0 %v191
    %409 = vmatpush.msra.mxu0 %v190
    %410 = vmatpush.msra.mxu0 %v189
    %411 = vmatpush.msra.mxu0 %v188
    %412 = vmatpush.msra.mxu0 %v187
    %413 = vmatpush.msra.mxu0 %v186
    %414 = vmatpush.msra.mxu0 %v185
    %415 = vmatmul.f32.gmra.mxu0 %v397
    %v416 = vpop.f32.mrf.mxu0
    %v417 = vadd.f32 0.0, %v416
    %418 = vdwg.mxu0
    %v420 = vsel %vm193, %v374, 0
    %422 = vmatpush.msra.mxu0 0.0
    %423 = vmatpush.msra.mxu0 0.0
    %424 = vmatpush.msra.mxu0 0.0
    %425 = vmatpush.msra.mxu0 0.0
    %426 = vmatpush.msra.mxu0 0.0
    %427 = vmatpush.msra.mxu0 0.0
    %428 = vmatpush.msra.mxu0 0.0
    %429 = vmatpush.msra.mxu0 0.0
    %430 = vmatpush.msra.mxu0 %v158
    %431 = vmatpush.msra.mxu0 %v157
    %432 = vmatpush.msra.mxu0 %v156
    %433 = vmatpush.msra.mxu0 %v155
    %434 = vmatpush.msra.mxu0 %v154
    %435 = vmatpush.msra.mxu0 %v153
    %436 = vmatpush.msra.mxu0 %v152
    %437 = vmatpush.msra.mxu0 %v151
    %438 = vmatmul.f32.gmra.mxu0 %v420
    %v439 = vpop.f32.mrf.mxu0
    %v440 = vadd.f32 %v417, %v439
    %441 = vdwg.mxu0
    %442 = vmatpush.msra.mxu0 0.0
    %443 = vmatpush.msra.mxu0 0.0
    %444 = vmatpush.msra.mxu0 0.0
    %445 = vmatpush.msra.mxu0 0.0
    %446 = vmatpush.msra.mxu0 0.0
    %447 = vmatpush.msra.mxu0 0.0
    %448 = vmatpush.msra.mxu0 0.0
    %449 = vmatpush.msra.mxu0 0.0
    %450 = vmatpush.msra.mxu0 0.0
    %451 = vmatpush.msra.mxu0 0.0
    %452 = vmatpush.msra.mxu0 0.0
    %453 = vmatpush.msra.mxu0 0.0
    %454 = vmatpush.msra.mxu0 0.0
    %455 = vmatpush.msra.mxu0 0.0
    %456 = vmatpush.msra.mxu0 %v125
    %457 = vmatpush.msra.mxu0 %v124
    %458 = vmatmul.f32.gmra.mxu0 %v243
    %v459 = vpop.f32.mrf.mxu0
    %v460 = vadd.f32 0.0, %v459
    %461 = vdwg.mxu0
    %v463 = vsel %vm193, %v460, 0
    %465 = vmatpush.msra.mxu0 0.0
    %466 = vmatpush.msra.mxu0 0.0
    %467 = vmatpush.msra.mxu0 0.0
    %468 = vmatpush.msra.mxu0 0.0
    %469 = vmatpush.msra.mxu0 0.0
    %470 = vmatpush.msra.mxu0 0.0
    %471 = vmatpush.msra.mxu0 0.0
    %472 = vmatpush.msra.mxu0 0.0
    %473 = vmatpush.msra.mxu0 %v273
    %474 = vmatpush.msra.mxu0 %v272
    %475 = vmatpush.msra.mxu0 %v271
    %476 = vmatpush.msra.mxu0 %v270
    %477 = vmatpush.msra.mxu0 %v269
    %478 = vmatpush.msra.mxu0 %v268
    %479 = vmatpush.msra.mxu0 %v267
    %480 = vmatpush.msra.mxu0 %v266
    %481 = vmatmul.f32.gmra.mxu0 %v463
    %v482 = vpop.f32.mrf.mxu0
    %v483 = vadd.f32 0.0, %v482
    %484 = vdwg.mxu0
    %v485 = vadd.f32 %v440, %v483
    %486 = vmatpush.msra.mxu0 0.0
    %487 = vmatpush.msra.mxu0 0.0
    %488 = vmatpush.msra.mxu0 0.0
    %489 = vmatpush.msra.mxu0 0.0
    %490 = vmatpush.msra.mxu0 0.0
    %491 = vmatpush.msra.mxu0 0.0
    %492 = vmatpush.msra.mxu0 0.0
    %493 = vmatpush.msra.mxu0 0.0
    %494 = vmatpush.msra.mxu0 0.0
    %495 = vmatpush.msra.mxu0 0.0
    %496 = vmatpush.msra.mxu0 0.0
    %497 = vmatpush.msra.mxu0 0.0
    %498 = vmatpush.msra.mxu0 0.0
    %499 = vmatpush.msra.mxu0 0.0
    %500 = vmatpush.msra.mxu0 %v125
    %501 = vmatpush.msra.mxu0 %v124
    %502 = vmatmul.f32.gmra.mxu0 %v301
    %v503 = vpop.f32.mrf.mxu0
    %v504 = vadd.f32 0.0, %v503
    %505 = vdwg.mxu0
    %v507 = vsel %vm193, %v504, 0
    %509 = vmatpush.msra.mxu0 0.0
    %510 = vmatpush.msra.mxu0 0.0
    %511 = vmatpush.msra.mxu0 0.0
    %512 = vmatpush.msra.mxu0 0.0
    %513 = vmatpush.msra.mxu0 0.0
    %514 = vmatpush.msra.mxu0 0.0
    %515 = vmatpush.msra.mxu0 0.0
    %516 = vmatpush.msra.mxu0 0.0
    %517 = vmatpush.msra.mxu0 %v331
    %518 = vmatpush.msra.mxu0 %v330
    %519 = vmatpush.msra.mxu0 %v329
    %520 = vmatpush.msra.mxu0 %v328
    %521 = vmatpush.msra.mxu0 %v327
    %522 = vmatpush.msra.mxu0 %v326
    %523 = vmatpush.msra.mxu0 %v325
    %524 = vmatpush.msra.mxu0 %v324
    %525 = vmatmul.f32.gmra.mxu0 %v507
    %v526 = vpop.f32.mrf.mxu0
    %v527 = vadd.f32 0.0, %v526
    %528 = vdwg.mxu0
    %v529 = vadd.f32 %v485, %v527
    %vm530 = vcmp.ge.f32.partialorder %v355, 0.0
    %v531 = vmul.f32 %v355, 0.2
    %v532 = vsel %vm530, %v355, %v531
    %vm533 = vcmp.ge.f32.partialorder %v529, 0.0
    %v534 = vmul.f32 %v529, 0.2
    %v535 = vsel %vm533, %v529, %v534
    %v536 = vld [vmem:[#allocation8] sm:$0xf]
    %vm537 = vcmask 64512
    %v539 = vsel %vm537, %v536, 0
    %541 = vmatpush.msra.mxu0 0.0
    %542 = vmatpush.msra.mxu0 0.0
    %543 = vmatpush.msra.mxu0 0.0
    %544 = vmatpush.msra.mxu0 0.0
    %545 = vmatpush.msra.mxu0 0.0
    %546 = vmatpush.msra.mxu0 0.0
    %547 = vmatpush.msra.mxu0 0.0
    %548 = vmatpush.msra.mxu0 0.0
    %549 = vmatpush.msra.mxu0 0.0
    %550 = vmatpush.msra.mxu0 0.0
    %551 = vmatpush.msra.mxu0 0.0
    %552 = vmatpush.msra.mxu0 0.0
    %553 = vmatpush.msra.mxu0 0.0
    %554 = vmatpush.msra.mxu0 0.0
    %555 = vmatpush.msra.mxu0 0.0
    %556 = vmatpush.msra.mxu0 %v532
    %557 = vmatmul.f32.gmra.mxu0 %v539
    %v558 = vpop.f32.mrf.mxu0
    %v559 = vadd.f32 0.0, %v558
    %560 = vdwg.mxu0
    %v561 = vld [vmem:[#allocation10] sm:$0xff]
    %v562 = vld [vmem:[#allocation10 + $0x8] sm:$0xff]
    %v563 = vld [vmem:[#allocation10 + $0x10] sm:$0xff]
    %v564 = vld [vmem:[#allocation10 + $0x18] sm:$0xff]
    %v565 = vld [vmem:[#allocation10 + $0x20] sm:$0xff]
    %v566 = vld [vmem:[#allocation10 + $0x28] sm:$0xff]
    %v567 = vld [vmem:[#allocation10 + $0x30] sm:$0xff]
    %v568 = vld [vmem:[#allocation10 + $0x38] sm:$0xff]
    %s569 = scalar_lea.vmem [#allocation8], 4
    %v570 = vld [vmem:[%s569] sm:$0xf]
    %v572 = vsel %vm537, %v570, 0
    %574 = vmatpush.msra.mxu0 0.0
    %575 = vmatpush.msra.mxu0 0.0
    %576 = vmatpush.msra.mxu0 0.0
    %577 = vmatpush.msra.mxu0 0.0
    %578 = vmatpush.msra.mxu0 0.0
    %579 = vmatpush.msra.mxu0 0.0
    %580 = vmatpush.msra.mxu0 0.0
    %581 = vmatpush.msra.mxu0 0.0
    %582 = vmatpush.msra.mxu0 0.0
    %583 = vmatpush.msra.mxu0 0.0
    %584 = vmatpush.msra.mxu0 0.0
    %585 = vmatpush.msra.mxu0 0.0
    %586 = vmatpush.msra.mxu0 0.0
    %587 = vmatpush.msra.mxu0 0.0
    %588 = vmatpush.msra.mxu0 0.0
    %589 = vmatpush.msra.mxu0 %v532
    %590 = vmatmul.f32.gmra.mxu0 %v572
    %v591 = vpop.f32.mrf.mxu0
    %v592 = vadd.f32 0.0, %v591
    %593 = vdwg.mxu0
    %s594 = scalar_lea.vmem [#allocation10], 64
    %v595 = vld [vmem:[%s594] sm:$0xff]
    %v596 = vld [vmem:[%s594 + $0x8] sm:$0xff]
    %v597 = vld [vmem:[%s594 + $0x10] sm:$0xff]
    %v598 = vld [vmem:[%s594 + $0x18] sm:$0xff]
    %v599 = vld [vmem:[%s594 + $0x20] sm:$0xff]
    %v600 = vld [vmem:[%s594 + $0x28] sm:$0xff]
    %v601 = vld [vmem:[%s594 + $0x30] sm:$0xff]
    %v602 = vld [vmem:[%s594 + $0x38] sm:$0xff]
    %v604 = vsel %vm193, %v592, 0
    %606 = vmatpush.msra.mxu0 0.0
    %607 = vmatpush.msra.mxu0 0.0
    %608 = vmatpush.msra.mxu0 0.0
    %609 = vmatpush.msra.mxu0 0.0
    %610 = vmatpush.msra.mxu0 0.0
    %611 = vmatpush.msra.mxu0 0.0
    %612 = vmatpush.msra.mxu0 0.0
    %613 = vmatpush.msra.mxu0 0.0
    %614 = vmatpush.msra.mxu0 %v602
    %615 = vmatpush.msra.mxu0 %v601
    %616 = vmatpush.msra.mxu0 %v600
    %617 = vmatpush.msra.mxu0 %v599
    %618 = vmatpush.msra.mxu0 %v598
    %619 = vmatpush.msra.mxu0 %v597
    %620 = vmatpush.msra.mxu0 %v596
    %621 = vmatpush.msra.mxu0 %v595
    %622 = vmatmul.f32.gmra.mxu0 %v604
    %v623 = vpop.f32.mrf.mxu0
    %v624 = vadd.f32 0.0, %v623
    %625 = vdwg.mxu0
    %v627 = vsel %vm193, %v559, 0
    %629 = vmatpush.msra.mxu0 0.0
    %630 = vmatpush.msra.mxu0 0.0
    %631 = vmatpush.msra.mxu0 0.0
    %632 = vmatpush.msra.mxu0 0.0
    %633 = vmatpush.msra.mxu0 0.0
    %634 = vmatpush.msra.mxu0 0.0
    %635 = vmatpush.msra.mxu0 0.0
    %636 = vmatpush.msra.mxu0 0.0
    %637 = vmatpush.msra.mxu0 %v568
    %638 = vmatpush.msra.mxu0 %v567
    %639 = vmatpush.msra.mxu0 %v566
    %640 = vmatpush.msra.mxu0 %v565
    %641 = vmatpush.msra.mxu0 %v564
    %642 = vmatpush.msra.mxu0 %v563
    %643 = vmatpush.msra.mxu0 %v562
    %644 = vmatpush.msra.mxu0 %v561
    %645 = vmatmul.f32.gmra.mxu0 %v627
    %v646 = vpop.f32.mrf.mxu0
    %v647 = vadd.f32 %v624, %v646
    %648 = vdwg.mxu0
    %s649 = scalar_lea.vmem [#allocation8], 8
    %v650 = vld [vmem:[%s649] sm:$0xf]
    %v652 = vsel %vm537, %v650, 0
    %654 = vmatpush.msra.mxu0 0.0
    %655 = vmatpush.msra.mxu0 0.0
    %656 = vmatpush.msra.mxu0 0.0
    %657 = vmatpush.msra.mxu0 0.0
    %658 = vmatpush.msra.mxu0 0.0
    %659 = vmatpush.msra.mxu0 0.0
    %660 = vmatpush.msra.mxu0 0.0
    %661 = vmatpush.msra.mxu0 0.0
    %662 = vmatpush.msra.mxu0 0.0
    %663 = vmatpush.msra.mxu0 0.0
    %664 = vmatpush.msra.mxu0 0.0
    %665 = vmatpush.msra.mxu0 0.0
    %666 = vmatpush.msra.mxu0 0.0
    %667 = vmatpush.msra.mxu0 0.0
    %668 = vmatpush.msra.mxu0 0.0
    %669 = vmatpush.msra.mxu0 %v532
    %670 = vmatmul.f32.gmra.mxu0 %v652
    %v671 = vpop.f32.mrf.mxu0
    %v672 = vadd.f32 0.0, %v671
    %673 = vdwg.mxu0
    %s674 = scalar_lea.vmem [#allocation10], 128
    %v675 = vld [vmem:[%s674] sm:$0xff]
    %v676 = vld [vmem:[%s674 + $0x8] sm:$0xff]
    %v677 = vld [vmem:[%s674 + $0x10] sm:$0xff]
    %v678 = vld [vmem:[%s674 + $0x18] sm:$0xff]
    %v679 = vld [vmem:[%s674 + $0x20] sm:$0xff]
    %v680 = vld [vmem:[%s674 + $0x28] sm:$0xff]
    %v681 = vld [vmem:[%s674 + $0x30] sm:$0xff]
    %v682 = vld [vmem:[%s674 + $0x38] sm:$0xff]
    %v684 = vsel %vm193, %v672, 0
    %686 = vmatpush.msra.mxu0 0.0
    %687 = vmatpush.msra.mxu0 0.0
    %688 = vmatpush.msra.mxu0 0.0
    %689 = vmatpush.msra.mxu0 0.0
    %690 = vmatpush.msra.mxu0 0.0
    %691 = vmatpush.msra.mxu0 0.0
    %692 = vmatpush.msra.mxu0 0.0
    %693 = vmatpush.msra.mxu0 0.0
    %694 = vmatpush.msra.mxu0 %v682
    %695 = vmatpush.msra.mxu0 %v681
    %696 = vmatpush.msra.mxu0 %v680
    %697 = vmatpush.msra.mxu0 %v679
    %698 = vmatpush.msra.mxu0 %v678
    %699 = vmatpush.msra.mxu0 %v677
    %700 = vmatpush.msra.mxu0 %v676
    %701 = vmatpush.msra.mxu0 %v675
    %702 = vmatmul.f32.gmra.mxu0 %v684
    %v703 = vpop.f32.mrf.mxu0
    %v704 = vadd.f32 0.0, %v703
    %705 = vdwg.mxu0
    %v706 = vadd.f32 %v647, %v704
    %s707 = scalar_lea.vmem [#allocation8], 12
    %v708 = vld [vmem:[%s707] sm:$0xf]
    %v710 = vsel %vm537, %v708, 0
    %712 = vmatpush.msra.mxu0 0.0
    %713 = vmatpush.msra.mxu0 0.0
    %714 = vmatpush.msra.mxu0 0.0
    %715 = vmatpush.msra.mxu0 0.0
    %716 = vmatpush.msra.mxu0 0.0
    %717 = vmatpush.msra.mxu0 0.0
    %718 = vmatpush.msra.mxu0 0.0
    %719 = vmatpush.msra.mxu0 0.0
    %720 = vmatpush.msra.mxu0 0.0
    %721 = vmatpush.msra.mxu0 0.0
    %722 = vmatpush.msra.mxu0 0.0
    %723 = vmatpush.msra.mxu0 0.0
    %724 = vmatpush.msra.mxu0 0.0
    %725 = vmatpush.msra.mxu0 0.0
    %726 = vmatpush.msra.mxu0 0.0
    %727 = vmatpush.msra.mxu0 %v532
    %728 = vmatmul.f32.gmra.mxu0 %v710
    %v729 = vpop.f32.mrf.mxu0
    %v730 = vadd.f32 0.0, %v729
    %731 = vdwg.mxu0
    %s732 = scalar_lea.vmem [#allocation10], 192
    %v733 = vld [vmem:[%s732] sm:$0xff]
    %v734 = vld [vmem:[%s732 + $0x8] sm:$0xff]
    %v735 = vld [vmem:[%s732 + $0x10] sm:$0xff]
    %v736 = vld [vmem:[%s732 + $0x18] sm:$0xff]
    %v737 = vld [vmem:[%s732 + $0x20] sm:$0xff]
    %v738 = vld [vmem:[%s732 + $0x28] sm:$0xff]
    %v739 = vld [vmem:[%s732 + $0x30] sm:$0xff]
    %v740 = vld [vmem:[%s732 + $0x38] sm:$0xff]
    %v742 = vsel %vm193, %v730, 0
    %744 = vmatpush.msra.mxu0 0.0
    %745 = vmatpush.msra.mxu0 0.0
    %746 = vmatpush.msra.mxu0 0.0
    %747 = vmatpush.msra.mxu0 0.0
    %748 = vmatpush.msra.mxu0 0.0
    %749 = vmatpush.msra.mxu0 0.0
    %750 = vmatpush.msra.mxu0 0.0
    %751 = vmatpush.msra.mxu0 0.0
    %752 = vmatpush.msra.mxu0 %v740
    %753 = vmatpush.msra.mxu0 %v739
    %754 = vmatpush.msra.mxu0 %v738
    %755 = vmatpush.msra.mxu0 %v737
    %756 = vmatpush.msra.mxu0 %v736
    %757 = vmatpush.msra.mxu0 %v735
    %758 = vmatpush.msra.mxu0 %v734
    %759 = vmatpush.msra.mxu0 %v733
    %760 = vmatmul.f32.gmra.mxu0 %v742
    %v761 = vpop.f32.mrf.mxu0
    %v762 = vadd.f32 0.0, %v761
    %763 = vdwg.mxu0
    %v764 = vadd.f32 %v706, %v762
    %765 = vmatpush.msra.mxu0 0.0
    %766 = vmatpush.msra.mxu0 0.0
    %767 = vmatpush.msra.mxu0 0.0
    %768 = vmatpush.msra.mxu0 0.0
    %769 = vmatpush.msra.mxu0 0.0
    %770 = vmatpush.msra.mxu0 0.0
    %771 = vmatpush.msra.mxu0 0.0
    %772 = vmatpush.msra.mxu0 0.0
    %773 = vmatpush.msra.mxu0 0.0
    %774 = vmatpush.msra.mxu0 0.0
    %775 = vmatpush.msra.mxu0 0.0
    %776 = vmatpush.msra.mxu0 0.0
    %777 = vmatpush.msra.mxu0 0.0
    %778 = vmatpush.msra.mxu0 0.0
    %779 = vmatpush.msra.mxu0 0.0
    %780 = vmatpush.msra.mxu0 %v535
    %781 = vmatmul.f32.gmra.mxu0 %v539
    %v782 = vpop.f32.mrf.mxu0
    %v783 = vadd.f32 0.0, %v782
    %784 = vdwg.mxu0
    %785 = vmatpush.msra.mxu0 0.0
    %786 = vmatpush.msra.mxu0 0.0
    %787 = vmatpush.msra.mxu0 0.0
    %788 = vmatpush.msra.mxu0 0.0
    %789 = vmatpush.msra.mxu0 0.0
    %790 = vmatpush.msra.mxu0 0.0
    %791 = vmatpush.msra.mxu0 0.0
    %792 = vmatpush.msra.mxu0 0.0
    %793 = vmatpush.msra.mxu0 0.0
    %794 = vmatpush.msra.mxu0 0.0
    %795 = vmatpush.msra.mxu0 0.0
    %796 = vmatpush.msra.mxu0 0.0
    %797 = vmatpush.msra.mxu0 0.0
    %798 = vmatpush.msra.mxu0 0.0
    %799 = vmatpush.msra.mxu0 0.0
    %800 = vmatpush.msra.mxu0 %v535
    %801 = vmatmul.f32.gmra.mxu0 %v572
    %v802 = vpop.f32.mrf.mxu0
    %v803 = vadd.f32 0.0, %v802
    %804 = vdwg.mxu0
    %v806 = vsel %vm193, %v803, 0
    %808 = vmatpush.msra.mxu0 0.0
    %809 = vmatpush.msra.mxu0 0.0
    %810 = vmatpush.msra.mxu0 0.0
    %811 = vmatpush.msra.mxu0 0.0
    %812 = vmatpush.msra.mxu0 0.0
    %813 = vmatpush.msra.mxu0 0.0
    %814 = vmatpush.msra.mxu0 0.0
    %815 = vmatpush.msra.mxu0 0.0
    %816 = vmatpush.msra.mxu0 %v602
    %817 = vmatpush.msra.mxu0 %v601
    %818 = vmatpush.msra.mxu0 %v600
    %819 = vmatpush.msra.mxu0 %v599
    %820 = vmatpush.msra.mxu0 %v598
    %821 = vmatpush.msra.mxu0 %v597
    %822 = vmatpush.msra.mxu0 %v596
    %823 = vmatpush.msra.mxu0 %v595
    %824 = vmatmul.f32.gmra.mxu0 %v806
    %v825 = vpop.f32.mrf.mxu0
    %v826 = vadd.f32 0.0, %v825
    %827 = vdwg.mxu0
    %v829 = vsel %vm193, %v783, 0
    %831 = vmatpush.msra.mxu0 0.0
    %832 = vmatpush.msra.mxu0 0.0
    %833 = vmatpush.msra.mxu0 0.0
    %834 = vmatpush.msra.mxu0 0.0
    %835 = vmatpush.msra.mxu0 0.0
    %836 = vmatpush.msra.mxu0 0.0
    %837 = vmatpush.msra.mxu0 0.0
    %838 = vmatpush.msra.mxu0 0.0
    %839 = vmatpush.msra.mxu0 %v568
    %840 = vmatpush.msra.mxu0 %v567
    %841 = vmatpush.msra.mxu0 %v566
    %842 = vmatpush.msra.mxu0 %v565
    %843 = vmatpush.msra.mxu0 %v564
    %844 = vmatpush.msra.mxu0 %v563
    %845 = vmatpush.msra.mxu0 %v562
    %846 = vmatpush.msra.mxu0 %v561
    %847 = vmatmul.f32.gmra.mxu0 %v829
    %v848 = vpop.f32.mrf.mxu0
    %v849 = vadd.f32 %v826, %v848
    %850 = vdwg.mxu0
    %851 = vmatpush.msra.mxu0 0.0
    %852 = vmatpush.msra.mxu0 0.0
    %853 = vmatpush.msra.mxu0 0.0
    %854 = vmatpush.msra.mxu0 0.0
    %855 = vmatpush.msra.mxu0 0.0
    %856 = vmatpush.msra.mxu0 0.0
    %857 = vmatpush.msra.mxu0 0.0
    %858 = vmatpush.msra.mxu0 0.0
    %859 = vmatpush.msra.mxu0 0.0
    %860 = vmatpush.msra.mxu0 0.0
    %861 = vmatpush.msra.mxu0 0.0
    %862 = vmatpush.msra.mxu0 0.0
    %863 = vmatpush.msra.mxu0 0.0
    %864 = vmatpush.msra.mxu0 0.0
    %865 = vmatpush.msra.mxu0 0.0
    %866 = vmatpush.msra.mxu0 %v535
    %867 = vmatmul.f32.gmra.mxu0 %v652
    %v868 = vpop.f32.mrf.mxu0
    %v869 = vadd.f32 0.0, %v868
    %870 = vdwg.mxu0
    %v872 = vsel %vm193, %v869, 0
    %874 = vmatpush.msra.mxu0 0.0
    %875 = vmatpush.msra.mxu0 0.0
    %876 = vmatpush.msra.mxu0 0.0
    %877 = vmatpush.msra.mxu0 0.0
    %878 = vmatpush.msra.mxu0 0.0
    %879 = vmatpush.msra.mxu0 0.0
    %880 = vmatpush.msra.mxu0 0.0
    %881 = vmatpush.msra.mxu0 0.0
    %882 = vmatpush.msra.mxu0 %v682
    %883 = vmatpush.msra.mxu0 %v681
    %884 = vmatpush.msra.mxu0 %v680
    %885 = vmatpush.msra.mxu0 %v679
    %886 = vmatpush.msra.mxu0 %v678
    %887 = vmatpush.msra.mxu0 %v677
    %888 = vmatpush.msra.mxu0 %v676
    %889 = vmatpush.msra.mxu0 %v675
    %890 = vmatmul.f32.gmra.mxu0 %v872
    %v891 = vpop.f32.mrf.mxu0
    %v892 = vadd.f32 0.0, %v891
    %893 = vdwg.mxu0
    %v894 = vadd.f32 %v849, %v892
    %895 = vmatpush.msra.mxu0 0.0
    %896 = vmatpush.msra.mxu0 0.0
    %897 = vmatpush.msra.mxu0 0.0
    %898 = vmatpush.msra.mxu0 0.0
    %899 = vmatpush.msra.mxu0 0.0
    %900 = vmatpush.msra.mxu0 0.0
    %901 = vmatpush.msra.mxu0 0.0
    %902 = vmatpush.msra.mxu0 0.0
    %903 = vmatpush.msra.mxu0 0.0
    %904 = vmatpush.msra.mxu0 0.0
    %905 = vmatpush.msra.mxu0 0.0
    %906 = vmatpush.msra.mxu0 0.0
    %907 = vmatpush.msra.mxu0 0.0
    %908 = vmatpush.msra.mxu0 0.0
    %909 = vmatpush.msra.mxu0 0.0
    %910 = vmatpush.msra.mxu0 %v535
    %911 = vmatmul.f32.gmra.mxu0 %v710
    %v912 = vpop.f32.mrf.mxu0
    %v913 = vadd.f32 0.0, %v912
    %914 = vdwg.mxu0
    %v916 = vsel %vm193, %v913, 0
    %918 = vmatpush.msra.mxu0 0.0
    %919 = vmatpush.msra.mxu0 0.0
    %920 = vmatpush.msra.mxu0 0.0
    %921 = vmatpush.msra.mxu0 0.0
    %922 = vmatpush.msra.mxu0 0.0
    %923 = vmatpush.msra.mxu0 0.0
    %924 = vmatpush.msra.mxu0 0.0
    %925 = vmatpush.msra.mxu0 0.0
    %926 = vmatpush.msra.mxu0 %v740
    %927 = vmatpush.msra.mxu0 %v739
    %928 = vmatpush.msra.mxu0 %v738
    %929 = vmatpush.msra.mxu0 %v737
    %930 = vmatpush.msra.mxu0 %v736
    %931 = vmatpush.msra.mxu0 %v735
    %932 = vmatpush.msra.mxu0 %v734
    %933 = vmatpush.msra.mxu0 %v733
    %934 = vmatmul.f32.gmra.mxu0 %v916
    %v935 = vpop.f32.mrf.mxu0
    %v936 = vadd.f32 0.0, %v935
    %937 = vdwg.mxu0
    %v938 = vadd.f32 %v894, %v936
    %v939 = vld [vmem:[#allocation11] sm:$0xff]
    %v940 = vld [vmem:[#allocation11 + $0x8] sm:$0xff]
    %v941 = vld [vmem:[#allocation11 + $0x10] sm:$0xff]
    %v942 = vld [vmem:[#allocation11 + $0x18] sm:$0xff]
    %v943 = vld [vmem:[#allocation11 + $0x20] sm:$0xff]
    %v944 = vld [vmem:[#allocation11 + $0x28] sm:$0xff]
    %v945 = vld [vmem:[#allocation11 + $0x30] sm:$0xff]
    %v946 = vld [vmem:[#allocation11 + $0x38] sm:$0xff]
    %vm947 = vcmask 519168
    %v948 = vsel %vm947, %v764, 0.0
    %v949 = vrot.slane %v948, 4
    %v950 = vadd.f32 %v948, %v949
    %v951 = vrot.slane %v950, 2
    %v952 = vadd.f32 %v950, %v951
    %v953 = vrot.slane %v952, 1
    %v954 = vadd.f32 %v952, %v953
    %v955 = vsel %vm947, %v938, 0.0
    %v956 = vrot.slane %v955, 4
    %v957 = vadd.f32 %v955, %v956
    %v958 = vrot.slane %v957, 2
    %v959 = vadd.f32 %v957, %v958
    %v960 = vrot.slane %v959, 1
    %v961 = vadd.f32 %v959, %v960
    %v962 = vadd.f32 %v954, %v961
    %v964 = vsel %vm193, %v962, 0
    %966 = vmatpush.msra.mxu0 0.0
    %967 = vmatpush.msra.mxu0 0.0
    %968 = vmatpush.msra.mxu0 0.0
    %969 = vmatpush.msra.mxu0 0.0
    %970 = vmatpush.msra.mxu0 0.0
    %971 = vmatpush.msra.mxu0 0.0
    %972 = vmatpush.msra.mxu0 0.0
    %973 = vmatpush.msra.mxu0 0.0
    %974 = vmatpush.msra.mxu0 %v946
    %975 = vmatpush.msra.mxu0 %v945
    %976 = vmatpush.msra.mxu0 %v944
    %977 = vmatpush.msra.mxu0 %v943
    %978 = vmatpush.msra.mxu0 %v942
    %979 = vmatpush.msra.mxu0 %v941
    %980 = vmatpush.msra.mxu0 %v940
    %981 = vmatpush.msra.mxu0 %v939
    %982 = vmatmul.f32.gmra.mxu0 %v964
    %v983 = vpop.f32.mrf.mxu0
    %v984 = vadd.f32 0.0, %v983
    %985 = vdwg.mxu0
    %v986 = vperm.slane %v984, 0
    %v987 = vsub.f32 %v764, %v986
    %v988 = vsub.f32 %v938, %v986
    %v989 = vmul.f32 %v987, %v987
    %v990 = vsel %vm947, %v989, 0.0
    %v991 = vrot.slane %v990, 4
    %v992 = vadd.f32 %v990, %v991
    %v993 = vrot.slane %v992, 2
    %v994 = vadd.f32 %v992, %v993
    %v995 = vrot.slane %v994, 1
    %v996 = vadd.f32 %v994, %v995
    %v997 = vmul.f32 %v988, %v988
    %v998 = vsel %vm947, %v997, 0.0
    %v999 = vrot.slane %v998, 4
    %v1000 = vadd.f32 %v998, %v999
    %v1001 = vrot.slane %v1000, 2
    %v1002 = vadd.f32 %v1000, %v1001
    %v1003 = vrot.slane %v1002, 1
    %v1004 = vadd.f32 %v1002, %v1003
    %v1005 = vadd.f32 %v996, %v1004
    %v1007 = vsel %vm193, %v1005, 0
    %1009 = vmatpush.msra.mxu0 0.0
    %1010 = vmatpush.msra.mxu0 0.0
    %1011 = vmatpush.msra.mxu0 0.0
    %1012 = vmatpush.msra.mxu0 0.0
    %1013 = vmatpush.msra.mxu0 0.0
    %1014 = vmatpush.msra.mxu0 0.0
    %1015 = vmatpush.msra.mxu0 0.0
    %1016 = vmatpush.msra.mxu0 0.0
    %1017 = vmatpush.msra.mxu0 %v946
    %1018 = vmatpush.msra.mxu0 %v945
    %1019 = vmatpush.msra.mxu0 %v944
    %1020 = vmatpush.msra.mxu0 %v943
    %1021 = vmatpush.msra.mxu0 %v942
    %1022 = vmatpush.msra.mxu0 %v941
    %1023 = vmatpush.msra.mxu0 %v940
    %1024 = vmatpush.msra.mxu0 %v939
    %1025 = vmatmul.f32.gmra.mxu0 %v1007
    %v1026 = vpop.f32.mrf.mxu0
    %v1027 = vadd.f32 1e-05, %v1026
    %1028 = vdwg.mxu0
    %v1029 = vrsqrt.pop %v1027
    %v1030 = vmul.f32 %v1029, %v1027
    %v1031 = vmul.f32 %v1030, %v1029
    %v1032 = vmul.f32 0.5, %v1031
    %v1033 = vsub.f32 1.5, %v1032
    %v1034 = vmul.f32 %v1029, %v1033
    %vm1035 = vweird.f32 %v1027
    %vm1036 = vweird.f32 %v1029
    %vm1037 = vmor %vm1035, %vm1036
    %v1038 = vsel %vm1037, %v1029, %v1034
    %vm1039 = vcmp.ge.f32.partialorder %v987, 0.0
    %v1040 = vmul.f32 %v987, 0.2
    %v1041 = vsel %vm1039, %v987, %v1040
    %v1042 = vperm.slane %v1038, 0
    %v1043 = vmul.f32 %v1041, %v1042
    %vm1044 = vcmp.ge.f32.partialorder %v988, 0.0
    %v1045 = vmul.f32 %v988, 0.2
    %v1046 = vsel %vm1044, %v988, %v1045
    %v1047 = vmul.f32 %v1046, %v1042
    %v1048 = vld [vmem:[%s6] sm:$0xf]
    %v1049 = vmul.f32 %v1043, %v1048
    %v1050 = vsel %vm947, %v1049, 0.0
    %1051 = vadd.xlane.f32.xlu0 %v1050
    %v1052 = vpop.xlane.xlu0 %1051
    %vm1053 = vcmask 1043456
    %v1054 = vsel %vm1053, %v1052, 0.0
    %v1055 = vrot.slane %v1054, 4
    %v1056 = vadd.f32 %v1054, %v1055
    %v1057 = vrot.slane %v1056, 2
    %v1058 = vadd.f32 %v1056, %v1057
    %v1059 = vrot.slane %v1058, 1
    %v1060 = vadd.f32 %v1058, %v1059
    %v1061 = vmul.f32 %v1047, %v1048
    %v1062 = vsel %vm947, %v1061, 0.0
    %1063 = vadd.xlane.f32.xlu0 %v1062
    %v1064 = vpop.xlane.xlu0 %1063
    %v1065 = vsel %vm1053, %v1064, 0.0
    %v1066 = vrot.slane %v1065, 4
    %v1067 = vadd.f32 %v1065, %v1066
    %v1068 = vrot.slane %v1067, 2
    %v1069 = vadd.f32 %v1067, %v1068
    %v1070 = vrot.slane %v1069, 1
    %v1071 = vadd.f32 %v1069, %v1070
    %v1072 = vadd.f32 %v1060, %v1071
    %vm1073 = vcmask 0
    %1074 = vst.msk [vmem:[#allocation13] sm:$0x1] %vm1073, %v1072
    // Predicated region
    $region54: #{tpu_custom_call.1} parent=1 // pred_check
      _
    $region55: #{tpu_custom_call.1} parent=1 // pred_check_branch
      %1076 = sbr.rel (0) target = $region57
    $region56: #{tpu_custom_call.1} parent=1 // pred_region
      %1078 = vsyncadd [#allocation4], 0
      %s1080 = sshll.u32 [#allocation13], 4
      %s1081 = int_to_ptr.vmem [resolvable:$true] %s1080
      %s1082 = sshll.u32 %s7, 4
      %s1083 = int_to_ptr.hbm [resolvable:$true] %s1082
      %1085 = dma.vmem_to_hbm [thread:$0]  %s1081, 16, %s1083, [#allocation4]
    $region57: #{tpu_custom_call.1} parent=1 // pred_fallthru
      _
    // Predicated region
    $region58: #{tpu_custom_call.1} parent=1 // pred_check
      _
    $region59: #{tpu_custom_call.1} parent=1 // pred_check_branch
      %1087 = sbr.rel (0) target = $region61
    $region60: #{tpu_custom_call.1} parent=1 // pred_region
      %1089 = dma.done [#allocation4], 16
    $region61: #{tpu_custom_call.1} parent=1 // pred_fallthru
      _
    %1090 = vsyncpa [#allocation3], 1
    %1091 = vsyncpa [#allocation6], 1
    %1092 = vsyncpa [#allocation9], 1
    %1093 = vsyncpa [#allocation12], 1
    %1094 = vsyncpa [#allocation4], 1

</llo_original>
